<compile_context>
chip_gen: v6e
topology: v6e:2x2x1
jax: 0.10.0
libtpu: 0.0.40
codegen_flags: <defaults>
</compile_context>

<pallas_src>
import math
from functools import partial

import jax
import jax.numpy as jnp
from jax import lax
from jax.experimental import pallas as pl
from jax.experimental.pallas import tpu as pltpu


def _mha_kernel(*refs, num_heads, d_k, compute_dtype, write_scores):
    (q_ref, k_ref, v_ref, mask_ref,
     wq_ref, bq_ref, wk_ref, bk_ref, wv_ref, bv_ref,
     wo_ref, bo_ref) = refs[:12]
    if write_scores:
        out_ref, scores_ref, kh_ref, vh_ref = refs[12:]
    else:
        out_ref, kh_ref, vh_ref = refs[12:]
        scores_ref = None

    H = num_heads

    def project_heads(x, w_ref, b_ref):
        # x: (n, D) -> (H, n, d_k) via one head-batched MXU contraction.
        # No per-head lane-axis slicing / jnp.stack (avoids XLU relayouts).
        xb = jnp.broadcast_to(x, (H,) + x.shape).astype(compute_dtype)
        y = lax.dot_general(xb, w_ref[...], (((2,), (1,)), ((0,), (0,))),
                            preferred_element_type=jnp.float32)
        return y + b_ref[...]                       # (H, 1, d_k) bias broadcast

    # ---- K/V projections: computed ONCE per batch element. The query-tile
    # grid axis is 'arbitrary', so this VMEM scratch persists across tiles. ----
    @pl.when(pl.program_id(1) == 0)
    def _():
        kh_ref[...] = project_heads(k_ref[0], wk_ref, bk_ref).astype(kh_ref.dtype)
        vh_ref[...] = project_heads(v_ref[0], wv_ref, bv_ref).astype(vh_ref.dtype)

    # Pre-scale queries by 1/sqrt(d_k) (cheaper than scaling (H, tq, S) scores).
    qh = (project_heads(q_ref[0], wq_ref, bq_ref)
          * (1.0 / math.sqrt(d_k))).astype(compute_dtype)        # (H, tq, d_k)
    kh = kh_ref[...]                                             # (H, S,  d_k)
    vh = vh_ref[...]                                             # (H, S,  d_k)

    # scores = Q @ K^T / sqrt(d_k), head-batched on the MXU.
    s = lax.dot_general(qh, kh, (((2,), (2,)), ((0,), (0,))),
                        preferred_element_type=jnp.float32)      # (H, tq, S)
    mask = mask_ref[0, 0].astype(jnp.int32)                      # int8 -> int32
    s = jnp.where(mask[None, :, :] == 0, jnp.float32(-1e9), s)
    if write_scores:
        # masked pre-softmax scores (matches torch's masked_fill_ semantics)
        scores_ref[0] = s.astype(scores_ref.dtype)

    # numerically stable softmax along keys (f32 throughout).
    s_max = jnp.max(s, axis=-1, keepdims=True)
    p = jnp.exp(s - s_max)
    p = p * pl.reciprocal(jnp.sum(p, axis=-1, keepdims=True), approx=True)
    # TODO(synk): attention dropout omitted (module evaluated in eval mode).

    ctx = lax.dot_general(p.astype(compute_dtype), vh,
                          (((2,), (1,)), ((0,), (0,))),
                          preferred_element_type=jnp.float32)    # (H, tq, d_k)

    # Output projection folded per head (no lane-axis concatenate):
    #   concat_h(ctx_h) @ Wo^T == sum_h ctx_h @ Wo^T[h*d_k:(h+1)*d_k, :]
    # TODO(synk): fold the head-sum into the MXU contraction (multi-contracting
    # dot_general) once Mosaic supports it; kept as batched-dot + cheap VPU sum.
    oh = lax.dot_general(ctx.astype(compute_dtype), wo_ref[...],
                         (((2,), (1,)), ((0,), (0,))),
                         preferred_element_type=jnp.float32)     # (H, tq, D)
    out_ref[0] = (jnp.sum(oh, axis=0) + bo_ref[...]).astype(out_ref.dtype)


def _const_spec(shape, single_buffer):
    """Grid-invariant BlockSpec; optionally single-buffered (v7x VMEM saver)."""
    ndim = len(shape)
    index_map = lambda b, i: (0,) * ndim
    if single_buffer:
        try:
            return pl.BlockSpec(shape, index_map, pipeline_mode=pl.Buffered(1))
        except Exception:          # older jax without pipeline_mode / Buffered(1)
            pass
    return pl.BlockSpec(shape, index_map)


def multi_head_attention(q, k, v, mask, params, *, num_heads, tq=None,
                         compute_dtype=jnp.float32,
                         return_scores=True, scores_dtype=jnp.float32):
    """q, k, v: (B, S, D) f32; mask: (B, 1, S, S) (nonzero = keep); params: W/b dict.

    compute_dtype: set jnp.bfloat16 on v6e/v7x for ~2x MXU throughput (softmax
    stays f32).  return_scores=False drops the (B, H, S, S) HBM writeback.
    """
    B, S, D = q.shape
    assert D % num_heads == 0, "d_model must be divisible by h"
    d_k = D // num_heads
    cd = jnp.dtype(compute_dtype)

    if tq is None:
        tq = S if S <= 256 else 256
        try:
            # v7x has 64 MiB VMEM per TC -> prefer a smaller query tile at large S.
            if (tq > 128 and S % 128 == 0 and
                    pltpu.get_tpu_info().vmem_capacity_bytes < (96 << 20)):
                tq = 128
        except Exception:
            pass
    assert S % tq == 0, "S must be divisible by the query tile"
    n_q = S // tq

    # One-time, free host/XLA-level re-layout of PyTorch-convention weights
    # into per-head slabs (so there is no in-kernel head splitting at all).
    wqh = params["wq"].T.reshape(D, num_heads, d_k).transpose(1, 0, 2).astype(cd)
    wkh = params["wk"].T.reshape(D, num_heads, d_k).transpose(1, 0, 2).astype(cd)
    wvh = params["wv"].T.reshape(D, num_heads, d_k).transpose(1, 0, 2).astype(cd)
    woh = params["wo"].T.reshape(num_heads, d_k, D).astype(cd)
    bqh = params["bq"].reshape(num_heads, 1, d_k).astype(jnp.float32)
    bkh = params["bk"].reshape(num_heads, 1, d_k).astype(jnp.float32)
    bvh = params["bv"].reshape(num_heads, 1, d_k).astype(jnp.float32)
    bo = params["bo"].reshape(1, D).astype(jnp.float32)

    # int8 keep-mask: 4x less HBM DMA than int32.  (For non-toy shapes with an
    # int8 mask, tq must be a multiple of 32 per the (32, 128) tiling rule.)
    mask_i = (mask != 0).astype(jnp.int8)

    q_spec = pl.BlockSpec((1, tq, D), lambda b, i: (b, i, 0))
    kv_spec = pl.BlockSpec((1, S, D), lambda b, i: (b, 0, 0))
    mask_spec = pl.BlockSpec((1, 1, tq, S), lambda b, i: (b, 0, i, 0))

    # Grid-invariant weights/biases: fetched once; single-buffer them only when
    # they are big enough to threaten VMEM (v7x, large D) - no-op at toy shapes.
    single_buffer = 4 * D * D * cd.itemsize > (4 << 20)
    w_spec = _const_spec((num_heads, D, d_k), single_buffer)
    b_spec = _const_spec((num_heads, 1, d_k), single_buffer)
    wo_spec = _const_spec((num_heads, d_k, D), single_buffer)
    bo_spec = _const_spec((1, D), single_buffer)

    out_spec = pl.BlockSpec((1, tq, D), lambda b, i: (b, i, 0))
    if return_scores:
        out_shape = (jax.ShapeDtypeStruct((B, S, D), jnp.float32),
                     jax.ShapeDtypeStruct((B, num_heads, S, S), scores_dtype))
        out_specs = [out_spec,
                     pl.BlockSpec((1, num_heads, tq, S), lambda b, i: (b, 0, i, 0))]
    else:
        out_shape = jax.ShapeDtypeStruct((B, S, D), jnp.float32)
        out_specs = out_spec

    kernel = partial(_mha_kernel, num_heads=num_heads, d_k=d_k,
                     compute_dtype=cd, write_scores=return_scores)

    return pl.pallas_call(
        kernel,
        out_shape=out_shape,
        grid_spec=pltpu.PrefetchScalarGridSpec(
            num_scalar_prefetch=0,
            grid=(B, n_q),
            in_specs=[q_spec, kv_spec, kv_spec, mask_spec,
                      w_spec, b_spec, w_spec, b_spec, w_spec, b_spec,
                      wo_spec, bo_spec],
            out_specs=out_specs,
            # Persistent per-batch-element K/V projections (head-split layout).
            scratch_shapes=[pltpu.VMEM((num_heads, S, d_k), cd),
                            pltpu.VMEM((num_heads, S, d_k), cd)]),
        compiler_params=pltpu.CompilerParams(
            # batch axis parallel (v7x megacore: each TC owns whole batch
            # elements so its cached Kh/Vh scratch stays valid); query-tile
            # axis must be 'arbitrary' for the persistent scratch.
            dimension_semantics=("parallel", "arbitrary"),
            vmem_limit_bytes=32 << 20),
    )(q, k, v, mask_i, wqh, bqh, wkh, bkh, wvh, bvh, woh, bo)


def _reference(q, k, v, mask, params, *, num_heads):
    """Pure-JAX reference mirroring the PyTorch forward (eval mode)."""
    B, S, D = q.shape
    d_k = D // num_heads

    def lin(x, w, b):
        return x @ w.T + b

    Q = lin(q, params["wq"], params["bq"]).reshape(B, S, num_heads, d_k).transpose(0, 2, 1, 3)
    K = lin(k, params["wk"], params["bk"]).reshape(B, S, num_heads, d_k).transpose(0, 2, 1, 3)
    V = lin(v, params["wv"], params["bv"]).reshape(B, S, num_heads, d_k).transpose(0, 2, 1, 3)
    s = jnp.einsum("bhqd,bhkd->bhqk", Q, K) / math.sqrt(d_k)
    s = jnp.where(mask == 0, -1e9, s)
    p = jax.nn.softmax(s, axis=-1)
    x = jnp.einsum("bhqk,bhkd->bhqd", p, V)
    x = x.transpose(0, 2, 1, 3).reshape(B, S, D)
    return lin(x, params["wo"], params["bo"]), s


if __name__ == "__main__":
    B, S, D, H = 2, 8, 32, 4   # batch, seq, d_model, heads

    key = jax.random.PRNGKey(0)
    keys = jax.random.split(key, 12)

    def init_linear(kw, kb, d):
        bound = 1.0 / math.sqrt(d)
        w = jax.random.uniform(kw, (d, d), jnp.float32, -bound, bound)
        b = jax.random.uniform(kb, (d,), jnp.float32, -bound, bound)
        return w, b

    wq, bq = init_linear(keys[0], keys[1], D)
    wk, bk = init_linear(keys[2], keys[3], D)
    wv, bv = init_linear(keys[4], keys[5], D)
    wo, bo = init_linear(keys[6], keys[7], D)
    params = dict(wq=wq, bq=bq, wk=wk, bk=bk, wv=wv, bv=bv, wo=wo, bo=bo)

    q = jax.random.normal(keys[8], (B, S, D), jnp.float32)
    k = jax.random.normal(keys[9], (B, S, D), jnp.float32)
    v = jax.random.normal(keys[10], (B, S, D), jnp.float32)
    # causal mask, shape (B, 1, S, S), 1 = attend, 0 = masked
    causal = jnp.tril(jnp.ones((S, S), jnp.float32))
    mask = jnp.broadcast_to(causal, (B, 1, S, S))

    # Full forward: output + masked pre-softmax attention scores.
    out, scores = multi_head_attention(q, k, v, mask, params, num_heads=H)
    out = jax.block_until_ready(out)
    scores = jax.block_until_ready(scores)

    ref_out, ref_scores = _reference(q, k, v, mask, params, num_heads=H)
    # out tolerance allows for the approximate (EUP) reciprocal in the softmax
    # normalization (~1e-4 relative), standard in TPU attention kernels.
    assert jnp.allclose(out, ref_out, atol=5e-3, rtol=5e-3)
    assert jnp.allclose(scores, ref_scores, atol=1e-3, rtol=1e-4)

    # Scores-free path (drops the (B,H,S,S) HBM writeback entirely).
    out_only = multi_head_attention(q, k, v, mask, params, num_heads=H,
                                    return_scores=False)
    out_only = jax.block_until_ready(out_only)
    assert jnp.allclose(out_only, ref_out, atol=5e-3, rtol=5e-3)

    print("KERNEL_OK")
</pallas_src>

<mosaic_0001>
module attributes {stable_mosaic.version = 11 : i64} {
  func.func @_mha_kernel(%arg0: i32, %arg1: i32, %arg2: memref<1x8x32xf32, #tpu.memory_space<vmem>>, %arg3: memref<1x8x32xf32, #tpu.memory_space<vmem>>, %arg4: memref<1x8x32xf32, #tpu.memory_space<vmem>>, %arg5: memref<1x1x8x8xi8, #tpu.memory_space<vmem>>, %arg6: memref<4x32x8xf32, #tpu.memory_space<vmem>>, %arg7: memref<4x1x8xf32, #tpu.memory_space<vmem>>, %arg8: memref<4x32x8xf32, #tpu.memory_space<vmem>>, %arg9: memref<4x1x8xf32, #tpu.memory_space<vmem>>, %arg10: memref<4x32x8xf32, #tpu.memory_space<vmem>>, %arg11: memref<4x1x8xf32, #tpu.memory_space<vmem>>, %arg12: memref<4x8x32xf32, #tpu.memory_space<vmem>>, %arg13: memref<1x32xf32, #tpu.memory_space<vmem>>, %arg14: memref<1x8x32xf32, #tpu.memory_space<vmem>>, %arg15: memref<1x4x8x8xf32, #tpu.memory_space<vmem>>, %arg16: memref<4x8x8xf32, #tpu.memory_space<vmem>>, %arg17: memref<4x8x8xf32, #tpu.memory_space<vmem>>) attributes {dimension_semantics = [#tpu.dimension_semantics<parallel>, #tpu.dimension_semantics<arbitrary>], iteration_bounds = array<i64: 2, 1>, scalar_prefetch = 0 : i64, scratch_operands = 2 : i64, tpu.core_type = #tpu.core_type<tc>, window_params = [{transform_indices = @transform_0, window_bounds = array<i64: 1, 8, 32>}, {transform_indices = @transform_1, window_bounds = array<i64: 1, 8, 32>}, {transform_indices = @transform_2, window_bounds = array<i64: 1, 8, 32>}, {transform_indices = @transform_3, window_bounds = array<i64: 1, 1, 8, 8>}, {pipeline_mode = #tpu.pipeline_mode<synchronous>, transform_indices = @transform_4, window_bounds = array<i64: 4, 32, 8>}, {pipeline_mode = #tpu.pipeline_mode<synchronous>, transform_indices = @transform_5, window_bounds = array<i64: 4, 1, 8>}, {pipeline_mode = #tpu.pipeline_mode<synchronous>, transform_indices = @transform_6, window_bounds = array<i64: 4, 32, 8>}, {pipeline_mode = #tpu.pipeline_mode<synchronous>, transform_indices = @transform_7, window_bounds = array<i64: 4, 1, 8>}, {pipeline_mode = #tpu.pipeline_mode<synchronous>, transform_indices = @transform_8, window_bounds = array<i64: 4, 32, 8>}, {pipeline_mode = #tpu.pipeline_mode<synchronous>, transform_indices = @transform_9, window_bounds = array<i64: 4, 1, 8>}, {pipeline_mode = #tpu.pipeline_mode<synchronous>, transform_indices = @transform_10, window_bounds = array<i64: 4, 8, 32>}, {pipeline_mode = #tpu.pipeline_mode<synchronous>, transform_indices = @transform_11, window_bounds = array<i64: 1, 32>}, {transform_indices = @transform_12, window_bounds = array<i64: 1, 8, 32>}, {transform_indices = @transform_13, window_bounds = array<i64: 1, 4, 8, 8>}]} {
    %c0_i32 = arith.constant 0 : i32
    %0 = arith.cmpi eq, %arg1, %c0_i32 : i32
    %1 = arith.extui %0 : i1 to i32
    %c0_i32_0 = arith.constant 0 : i32
    %2 = arith.cmpi ne, %1, %c0_i32_0 : i32
    scf.if %2 {
      %c0_40 = arith.constant 0 : index
      %c0_41 = arith.constant 0 : index
      %c0_42 = arith.constant 0 : index
      %50 = vector.load %arg3[%c0_40, %c0_41, %c0_42] : memref<1x8x32xf32, #tpu.memory_space<vmem>>, vector<1x8x32xf32>
      %51 = vector.shape_cast %50 : vector<1x8x32xf32> to vector<8x32xf32>
      %52 = vector.shape_cast %51 : vector<8x32xf32> to vector<1x8x32xf32>
      %53 = vector.broadcast %52 : vector<1x8x32xf32> to vector<4x8x32xf32>
      %c0_43 = arith.constant 0 : index
      %c0_44 = arith.constant 0 : index
      %c0_45 = arith.constant 0 : index
      %54 = vector.load %arg8[%c0_43, %c0_44, %c0_45] : memref<4x32x8xf32, #tpu.memory_space<vmem>>, vector<4x32x8xf32>
      %cst_46 = arith.constant dense<0.000000e+00> : vector<4x8x8xf32>
      %55 = tpu.matmul %53, %54, %cst_46 {dimension_numbers = #tpu.dot_dimension_numbers<[2], [1], [1], [2], [0, 0, 0, 1, 1, 2], [0], [0]>} : vector<4x8x32xf32>, vector<4x32x8xf32>, vector<4x8x8xf32> -> vector<4x8x8xf32>
      %c0_47 = arith.constant 0 : index
      %c0_48 = arith.constant 0 : index
      %c0_49 = arith.constant 0 : index
      %56 = vector.load %arg9[%c0_47, %c0_48, %c0_49] : memref<4x1x8xf32, #tpu.memory_space<vmem>>, vector<4x1x8xf32>
      %57 = vector.broadcast %56 : vector<4x1x8xf32> to vector<4x8x8xf32>
      %58 = arith.addf %55, %57 : vector<4x8x8xf32>
      %c0_50 = arith.constant 0 : index
      %c0_51 = arith.constant 0 : index
      %c0_52 = arith.constant 0 : index
      %59 = vector.load %arg16[%c0_50, %c0_51, %c0_52] : memref<4x8x8xf32, #tpu.memory_space<vmem>>, vector<4x8x8xf32>
      tpu.vector_store %arg16[%c0_50, %c0_51, %c0_52], %58 {strides = array<i32>} : memref<4x8x8xf32, #tpu.memory_space<vmem>>, vector<4x8x8xf32>,
      %c0_53 = arith.constant 0 : index
      %c0_54 = arith.constant 0 : index
      %c0_55 = arith.constant 0 : index
      %60 = vector.load %arg4[%c0_53, %c0_54, %c0_55] : memref<1x8x32xf32, #tpu.memory_space<vmem>>, vector<1x8x32xf32>
      %61 = vector.shape_cast %60 : vector<1x8x32xf32> to vector<8x32xf32>
      %62 = vector.shape_cast %61 : vector<8x32xf32> to vector<1x8x32xf32>
      %63 = vector.broadcast %62 : vector<1x8x32xf32> to vector<4x8x32xf32>
      %c0_56 = arith.constant 0 : index
      %c0_57 = arith.constant 0 : index
      %c0_58 = arith.constant 0 : index
      %64 = vector.load %arg10[%c0_56, %c0_57, %c0_58] : memref<4x32x8xf32, #tpu.memory_space<vmem>>, vector<4x32x8xf32>
      %cst_59 = arith.constant dense<0.000000e+00> : vector<4x8x8xf32>
      %65 = tpu.matmul %63, %64, %cst_59 {dimension_numbers = #tpu.dot_dimension_numbers<[2], [1], [1], [2], [0, 0, 0, 1, 1, 2], [0], [0]>} : vector<4x8x32xf32>, vector<4x32x8xf32>, vector<4x8x8xf32> -> vector<4x8x8xf32>
      %c0_60 = arith.constant 0 : index
      %c0_61 = arith.constant 0 : index
      %c0_62 = arith.constant 0 : index
      %66 = vector.load %arg11[%c0_60, %c0_61, %c0_62] : memref<4x1x8xf32, #tpu.memory_space<vmem>>, vector<4x1x8xf32>
      %67 = vector.broadcast %66 : vector<4x1x8xf32> to vector<4x8x8xf32>
      %68 = arith.addf %65, %67 : vector<4x8x8xf32>
      %c0_63 = arith.constant 0 : index
      %c0_64 = arith.constant 0 : index
      %c0_65 = arith.constant 0 : index
      %69 = vector.load %arg17[%c0_63, %c0_64, %c0_65] : memref<4x8x8xf32, #tpu.memory_space<vmem>>, vector<4x8x8xf32>
      tpu.vector_store %arg17[%c0_63, %c0_64, %c0_65], %68 {strides = array<i32>} : memref<4x8x8xf32, #tpu.memory_space<vmem>>, vector<4x8x8xf32>,
    } else {
    }
    %c0 = arith.constant 0 : index
    %c0_1 = arith.constant 0 : index
    %c0_2 = arith.constant 0 : index
    %3 = vector.load %arg2[%c0, %c0_1, %c0_2] : memref<1x8x32xf32, #tpu.memory_space<vmem>>, vector<1x8x32xf32>
    %4 = vector.shape_cast %3 : vector<1x8x32xf32> to vector<8x32xf32>
    %5 = vector.shape_cast %4 : vector<8x32xf32> to vector<1x8x32xf32>
    %6 = vector.broadcast %5 : vector<1x8x32xf32> to vector<4x8x32xf32>
    %c0_3 = arith.constant 0 : index
    %c0_4 = arith.constant 0 : index
    %c0_5 = arith.constant 0 : index
    %7 = vector.load %arg6[%c0_3, %c0_4, %c0_5] : memref<4x32x8xf32, #tpu.memory_space<vmem>>, vector<4x32x8xf32>
    %cst = arith.constant dense<0.000000e+00> : vector<4x8x8xf32>
    %8 = tpu.matmul %6, %7, %cst {dimension_numbers = #tpu.dot_dimension_numbers<[2], [1], [1], [2], [0, 0, 0, 1, 1, 2], [0], [0]>} : vector<4x8x32xf32>, vector<4x32x8xf32>, vector<4x8x8xf32> -> vector<4x8x8xf32>
    %c0_6 = arith.constant 0 : index
    %c0_7 = arith.constant 0 : index
    %c0_8 = arith.constant 0 : index
    %9 = vector.load %arg7[%c0_6, %c0_7, %c0_8] : memref<4x1x8xf32, #tpu.memory_space<vmem>>, vector<4x1x8xf32>
    %10 = vector.broadcast %9 : vector<4x1x8xf32> to vector<4x8x8xf32>
    %11 = arith.addf %8, %10 : vector<4x8x8xf32>
    %cst_9 = arith.constant 0.353553385 : f32
    %12 = vector.broadcast %cst_9 : f32 to vector<4x8x8xf32>
    %13 = arith.mulf %11, %12 : vector<4x8x8xf32>
    %c0_10 = arith.constant 0 : index
    %c0_11 = arith.constant 0 : index
    %c0_12 = arith.constant 0 : index
    %14 = vector.load %arg16[%c0_10, %c0_11, %c0_12] : memref<4x8x8xf32, #tpu.memory_space<vmem>>, vector<4x8x8xf32>
    %c0_13 = arith.constant 0 : index
    %c0_14 = arith.constant 0 : index
    %c0_15 = arith.constant 0 : index
    %15 = vector.load %arg17[%c0_13, %c0_14, %c0_15] : memref<4x8x8xf32, #tpu.memory_space<vmem>>, vector<4x8x8xf32>
    %cst_16 = arith.constant dense<0.000000e+00> : vector<4x8x8xf32>
    %16 = tpu.matmul %13, %14, %cst_16 {dimension_numbers = #tpu.dot_dimension_numbers<[2], [2], [1], [1], [0, 0, 0, 1, 1, 1], [0], [0]>} : vector<4x8x8xf32>, vector<4x8x8xf32>, vector<4x8x8xf32> -> vector<4x8x8xf32>
    %c0_17 = arith.constant 0 : index
    %c0_18 = arith.constant 0 : index
    %c0_19 = arith.constant 0 : index
    %c0_20 = arith.constant 0 : index
    %17 = vector.load %arg5[%c0_17, %c0_18, %c0_19, %c0_20] : memref<1x1x8x8xi8, #tpu.memory_space<vmem>>, vector<1x1x8x8xi8>
    %18 = vector.shape_cast %17 : vector<1x1x8x8xi8> to vector<8x8xi8>
    %19 = arith.extsi %18 : vector<8x8xi8> to vector<8x8xi32>
    %20 = vector.shape_cast %19 : vector<8x8xi32> to vector<1x8x8xi32>
    %c0_i32_21 = arith.constant 0 : i32
    %21 = vector.broadcast %c0_i32_21 : i32 to vector<1x8x8xi32>
    %22 = arith.cmpi eq, %20, %21 : vector<1x8x8xi32>
    %cst_22 = arith.constant -1.000000e+09 : f32
    %23 = vector.shape_cast %22 : vector<1x8x8xi1> to vector<1x8x8xi1>
    %24 = vector.broadcast %23 : vector<1x8x8xi1> to vector<4x8x8xi1>
    %25 = vector.broadcast %cst_22 : f32 to vector<4x8x8xf32>
    %26 = arith.select %24, %25, %16 : vector<4x8x8xi1>, vector<4x8x8xf32>
    %c0_23 = arith.constant 0 : index
    %c0_24 = arith.constant 0 : index
    %c0_25 = arith.constant 0 : index
    %c0_26 = arith.constant 0 : index
    %27 = vector.load %arg15[%c0_23, %c0_24, %c0_25, %c0_26] : memref<1x4x8x8xf32, #tpu.memory_space<vmem>>, vector<1x4x8x8xf32>
    %28 = vector.shape_cast %27 : vector<1x4x8x8xf32> to vector<4x8x8xf32>
    %29 = vector.shape_cast %26 : vector<4x8x8xf32> to vector<1x4x8x8xf32>
    tpu.vector_store %arg15[%c0_23, %c0_24, %c0_25, %c0_26], %29 {strides = array<i32>} : memref<1x4x8x8xf32, #tpu.memory_space<vmem>>, vector<1x4x8x8xf32>,
    %cst_27 = arith.constant dense<0xFF800000> : vector<4x8xf32>
    %30 = vector.multi_reduction <maximumf>, %26, %cst_27 [2] : vector<4x8x8xf32> to vector<4x8xf32>
    %31 = vector.shape_cast %30 : vector<4x8xf32> to vector<4x8x1xf32>
    %32 = vector.broadcast %31 : vector<4x8x1xf32> to vector<4x8x8xf32>
    %33 = arith.subf %26, %32 : vector<4x8x8xf32>
    %34 = math.exp %33 : vector<4x8x8xf32>
    %cst_28 = arith.constant dense<0.000000e+00> : vector<4x8xf32>
    %35 = vector.multi_reduction <add>, %34, %cst_28 [2] : vector<4x8x8xf32> to vector<4x8xf32>
    %36 = vector.shape_cast %35 : vector<4x8xf32> to vector<4x8x1xf32>
    %37 = tpu.reciprocal %36 {approx = true} : vector<4x8x1xf32> -> vector<4x8x1xf32>
    %38 = vector.broadcast %37 : vector<4x8x1xf32> to vector<4x8x8xf32>
    %39 = arith.mulf %34, %38 : vector<4x8x8xf32>
    %cst_29 = arith.constant dense<0.000000e+00> : vector<4x8x8xf32>
    %40 = tpu.matmul %39, %15, %cst_29 {dimension_numbers = #tpu.dot_dimension_numbers<[2], [1], [1], [2], [0, 0, 0, 1, 1, 2], [0], [0]>} : vector<4x8x8xf32>, vector<4x8x8xf32>, vector<4x8x8xf32> -> vector<4x8x8xf32>
    %c0_30 = arith.constant 0 : index
    %c0_31 = arith.constant 0 : index
    %c0_32 = arith.constant 0 : index
    %41 = vector.load %arg12[%c0_30, %c0_31, %c0_32] : memref<4x8x32xf32, #tpu.memory_space<vmem>>, vector<4x8x32xf32>
    %cst_33 = arith.constant dense<0.000000e+00> : vector<4x8x32xf32>
    %42 = tpu.matmul %40, %41, %cst_33 {dimension_numbers = #tpu.dot_dimension_numbers<[2], [1], [1], [2], [0, 0, 0, 1, 1, 2], [0], [0]>} : vector<4x8x8xf32>, vector<4x8x32xf32>, vector<4x8x32xf32> -> vector<4x8x32xf32>
    %cst_34 = arith.constant dense<0.000000e+00> : vector<8x32xf32>
    %43 = vector.multi_reduction <add>, %42, %cst_34 [0] : vector<4x8x32xf32> to vector<8x32xf32>
    %c0_35 = arith.constant 0 : index
    %c0_36 = arith.constant 0 : index
    %44 = vector.load %arg13[%c0_35, %c0_36] : memref<1x32xf32, #tpu.memory_space<vmem>>, vector<1x32xf32>
    %45 = vector.broadcast %44 : vector<1x32xf32> to vector<8x32xf32>
    %46 = arith.addf %43, %45 : vector<8x32xf32>
    %c0_37 = arith.constant 0 : index
    %c0_38 = arith.constant 0 : index
    %c0_39 = arith.constant 0 : index
    %47 = vector.load %arg14[%c0_37, %c0_38, %c0_39] : memref<1x8x32xf32, #tpu.memory_space<vmem>>, vector<1x8x32xf32>
    %48 = vector.shape_cast %47 : vector<1x8x32xf32> to vector<8x32xf32>
    %49 = vector.shape_cast %46 : vector<8x32xf32> to vector<1x8x32xf32>
    tpu.vector_store %arg14[%c0_37, %c0_38, %c0_39], %49 {strides = array<i32>} : memref<1x8x32xf32, #tpu.memory_space<vmem>>, vector<1x8x32xf32>,
    return
  }
  func.func @transform_0(%arg0: i32, %arg1: i32) -> (i32, i32, i32) {
    %c0_i32 = arith.constant 0 : i32
    %c0_i32_0 = arith.constant 0 : i32
    return %arg0, %arg1, %c0_i32 : i32, i32, i32
  }
  func.func @transform_1(%arg0: i32, %arg1: i32) -> (i32, i32, i32) {
    %c0_i32 = arith.constant 0 : i32
    %c0_i32_0 = arith.constant 0 : i32
    %c0_i32_1 = arith.constant 0 : i32
    return %arg0, %c0_i32, %c0_i32_0 : i32, i32, i32
  }
  func.func @transform_2(%arg0: i32, %arg1: i32) -> (i32, i32, i32) {
    %c0_i32 = arith.constant 0 : i32
    %c0_i32_0 = arith.constant 0 : i32
    %c0_i32_1 = arith.constant 0 : i32
    return %arg0, %c0_i32, %c0_i32_0 : i32, i32, i32
  }
  func.func @transform_3(%arg0: i32, %arg1: i32) -> (i32, i32, i32, i32) {
    %c0_i32 = arith.constant 0 : i32
    %c0_i32_0 = arith.constant 0 : i32
    %c0_i32_1 = arith.constant 0 : i32
    return %arg0, %c0_i32, %arg1, %c0_i32_0 : i32, i32, i32, i32
  }
  func.func @transform_4(%arg0: i32, %arg1: i32) -> (i32, i32, i32) {
    %c0_i32 = arith.constant 0 : i32
    %c0_i32_0 = arith.constant 0 : i32
    %c0_i32_1 = arith.constant 0 : i32
    %c0_i32_2 = arith.constant 0 : i32
    return %c0_i32, %c0_i32_0, %c0_i32_1 : i32, i32, i32
  }
  func.func @transform_5(%arg0: i32, %arg1: i32) -> (i32, i32, i32) {
    %c0_i32 = arith.constant 0 : i32
    %c0_i32_0 = arith.constant 0 : i32
    %c0_i32_1 = arith.constant 0 : i32
    %c0_i32_2 = arith.constant 0 : i32
    return %c0_i32, %c0_i32_0, %c0_i32_1 : i32, i32, i32
  }
  func.func @transform_6(%arg0: i32, %arg1: i32) -> (i32, i32, i32) {
    %c0_i32 = arith.constant 0 : i32
    %c0_i32_0 = arith.constant 0 : i32
    %c0_i32_1 = arith.constant 0 : i32
    %c0_i32_2 = arith.constant 0 : i32
    return %c0_i32, %c0_i32_0, %c0_i32_1 : i32, i32, i32
  }
  func.func @transform_7(%arg0: i32, %arg1: i32) -> (i32, i32, i32) {
    %c0_i32 = arith.constant 0 : i32
    %c0_i32_0 = arith.constant 0 : i32
    %c0_i32_1 = arith.constant 0 : i32
    %c0_i32_2 = arith.constant 0 : i32
    return %c0_i32, %c0_i32_0, %c0_i32_1 : i32, i32, i32
  }
  func.func @transform_8(%arg0: i32, %arg1: i32) -> (i32, i32, i32) {
    %c0_i32 = arith.constant 0 : i32
    %c0_i32_0 = arith.constant 0 : i32
    %c0_i32_1 = arith.constant 0 : i32
    %c0_i32_2 = arith.constant 0 : i32
    return %c0_i32, %c0_i32_0, %c0_i32_1 : i32, i32, i32
  }
  func.func @transform_9(%arg0: i32, %arg1: i32) -> (i32, i32, i32) {
    %c0_i32 = arith.constant 0 : i32
    %c0_i32_0 = arith.constant 0 : i32
    %c0_i32_1 = arith.constant 0 : i32
    %c0_i32_2 = arith.constant 0 : i32
    return %c0_i32, %c0_i32_0, %c0_i32_1 : i32, i32, i32
  }
  func.func @transform_10(%arg0: i32, %arg1: i32) -> (i32, i32, i32) {
    %c0_i32 = arith.constant 0 : i32
    %c0_i32_0 = arith.constant 0 : i32
    %c0_i32_1 = arith.constant 0 : i32
    %c0_i32_2 = arith.constant 0 : i32
    return %c0_i32, %c0_i32_0, %c0_i32_1 : i32, i32, i32
  }
  func.func @transform_11(%arg0: i32, %arg1: i32) -> (i32, i32) {
    %c0_i32 = arith.constant 0 : i32
    %c0_i32_0 = arith.constant 0 : i32
    %c0_i32_1 = arith.constant 0 : i32
    return %c0_i32, %c0_i32_0 : i32, i32
  }
  func.func @transform_12(%arg0: i32, %arg1: i32) -> (i32, i32, i32) {
    %c0_i32 = arith.constant 0 : i32
    %c0_i32_0 = arith.constant 0 : i32
    return %arg0, %arg1, %c0_i32 : i32, i32, i32
  }
  func.func @transform_13(%arg0: i32, %arg1: i32) -> (i32, i32, i32, i32) {
    %c0_i32 = arith.constant 0 : i32
    %c0_i32_0 = arith.constant 0 : i32
    %c0_i32_1 = arith.constant 0 : i32
    return %arg0, %c0_i32, %arg1, %c0_i32_0 : i32, i32, i32, i32
  }
}

</mosaic_0001>

<llo_original>
// kernel: tpu_custom_call.1
$region0: #{tpu_custom_call.1}
  #allocation0 [shape = 'u32[]', space=smem, size = 0x4, offset = 0x4, fixed_abs, tag = 'smem constant byte address 0x4 - core index']
  #allocation1 [shape = 'u32[144,128]{1,0:T(1,128)}', space=vmem, size = 0x12000, scoped, tag = 'internal scratch']
  #allocation2 [shape = 'f32[4,8,8]{2,1,0:T(8,128)}', space=vmem, size = 0x4000, scoped, tag = 'scratch operand']
  #allocation3 [shape = 'f32[4,8,8]{2,1,0:T(8,128)}', space=vmem, size = 0x4000, scoped, tag = 'scratch operand']
  %s0 = inlined_call_operand.vmem [shape: f32[2,8,32], index: 0, kind: input, shape index: {}]
  %s1 = inlined_call_operand.vmem [shape: f32[2,8,32], index: 1, kind: input, shape index: {}]
  %s2 = inlined_call_operand.vmem [shape: f32[2,8,32], index: 2, kind: input, shape index: {}]
  %s3 = inlined_call_operand.vmem [shape: s8[2,1,8,8], index: 3, kind: input, shape index: {}]
  %s4 = inlined_call_operand.vmem [shape: f32[4,32,8], index: 4, kind: input, shape index: {}]
  %s5 = inlined_call_operand.vmem [shape: f32[4,1,8], index: 5, kind: input, shape index: {}]
  %s6 = inlined_call_operand.vmem [shape: f32[4,32,8], index: 6, kind: input, shape index: {}]
  %s7 = inlined_call_operand.vmem [shape: f32[4,1,8], index: 7, kind: input, shape index: {}]
  %s8 = inlined_call_operand.vmem [shape: f32[4,32,8], index: 8, kind: input, shape index: {}]
  %s9 = inlined_call_operand.vmem [shape: f32[4,1,8], index: 9, kind: input, shape index: {}]
  %s10 = inlined_call_operand.vmem [shape: f32[4,8,32], index: 10, kind: input, shape index: {}]
  %s11 = inlined_call_operand.vmem [shape: f32[1,32], index: 11, kind: input, shape index: {}]
  %s12 = inlined_call_operand.hbm [shape: f32[2,8,32], index: 12, kind: output, shape index: {0}]
  %s13 = inlined_call_operand.hbm [shape: f32[2,4,8,8], index: 13, kind: output, shape index: {1}]
  %14 = xla_tuple %s12, %s13
  %s15 = sld [smem:[#allocation0]]
  $region93: #{tpu_custom_call.1} parent=0
    _
  %s17 = ssub.s32 1, %s15
  %s18 = scalar_select 0, %s17, %s15
  $region1: #{tpu_custom_call.1} parent=0
    #allocation4 [shape = 'u8[8192]{0}', space=vmem, size = 0x2000, scoped, tag = 'output window, operand 0']
    #allocation5 [shape = 's32[2]{0}', space=sflag, size = 0x8, scoped, tag = 'scoped memory for tpu_custom_call.1']
    #allocation6 [shape = 'u8[32768]{0}', space=vmem, size = 0x8000, scoped, tag = 'output window, operand 1']
    #allocation7 [shape = 's32[2]{0}', space=sflag, size = 0x8, scoped, tag = 'scoped memory for tpu_custom_call.1']
    %19 = vsyncpa [#allocation5], 0
    %s20 = scalar_lea.sflag [#allocation5], 1
    %21 = vsyncpa %s20, 0
    %22 = vsyncpa [#allocation7], 0
    %s23 = scalar_lea.sflag [#allocation7], 1
    %24 = vsyncpa %s23, 0
    loop: start=0, step=1, limit=4
    $region2: #{tpu_custom_call.1} parent=1 // loop_pre_header
      _
    $region3: #{tpu_custom_call.1} parent=1 // loop_header
      %s26 = sphi 0, %s30
      %p27 = scmp.ge.s32.totalorder %s26, 4
      %s33 = sphi 0, %s45
      %s34 = sphi 0, %s41
      %s35 = sphi 0, %s33
      %s36 = sphi 0, %s34
      %s37 = sphi 0, %s35
      %s38 = sphi 0, %s36
      %s50 = sphi 0, %s52
      %s53 = sphi 0, %s50
      %s54 = sphi 0, %s53
      %s70 = sphi 0, %s54
      %s76 = sphi 0, %s78
      %s79 = sphi 0, %s76
      %s80 = sphi 0, %s79
      %s96 = sphi 0, %s80
      %s102 = sphi 0, %s104
      %s105 = sphi 0, %s102
      %s106 = sphi 0, %s105
      %s122 = sphi 0, %s106
      %s130 = sphi 0, %s132
      %s133 = sphi 0, %s130
      %s134 = sphi 0, %s133
      %s150 = sphi 0, %s134
      %s154 = sphi 0, %s154
      %s156 = sphi 0, %s154
      %s157 = sphi 0, %s156
      %s171 = sphi 0, %s157
      %s175 = sphi 0, %s175
      %s177 = sphi 0, %s175
      %s178 = sphi 0, %s177
      %s192 = sphi 0, %s178
      %s196 = sphi 0, %s196
      %s198 = sphi 0, %s196
      %s199 = sphi 0, %s198
      %s213 = sphi 0, %s199
      %s217 = sphi 0, %s217
      %s219 = sphi 0, %s217
      %s220 = sphi 0, %s219
      %s234 = sphi 0, %s220
      %s238 = sphi 0, %s238
      %s240 = sphi 0, %s238
      %s241 = sphi 0, %s240
      %s255 = sphi 0, %s241
      %s259 = sphi 0, %s259
      %s261 = sphi 0, %s259
      %s262 = sphi 0, %s261
      %s276 = sphi 0, %s262
      %s280 = sphi 0, %s280
      %s282 = sphi 0, %s280
      %s283 = sphi 0, %s282
      %s297 = sphi 0, %s283
      %s301 = sphi 0, %s301
      %s303 = sphi 0, %s301
      %s304 = sphi 0, %s303
      %s318 = sphi 0, %s304
      %s326 = sphi 0, %s328
      %s329 = sphi 0, %s326
      %s330 = sphi 0, %s329
      %s346 = sphi 0, %s330
      %s354 = sphi 0, %s356
      %s357 = sphi 0, %s354
      %s358 = sphi 0, %s357
      %s374 = sphi 0, %s358
    $region4: #{tpu_custom_call.1} parent=1 // loop_header_branch
      %29 = sbr.rel (%p27) target = $region8
    $region5: #{tpu_custom_call.1} parent=1 // loop_body
      %s31 = ssub.s32 %s26, 1
      %s32 = ssub.s32 %s26, 2
      %s39 = sadd.s32 1, %s34
      %p40 = scmp.ge.s32.totalorder %s39, 1
      %s41 = scalar_select %p40, 0, %s39
      %s42 = sadd.s32 1, %s33
      %s43 = scalar_select %p40, %s42, %s33
      %p44 = scmp.ge.s32.totalorder %s43, 2
      %s45 = scalar_select %p44, 0, %s43
      %s46 = ssub.s32 %s33, %s45
      %s47 = ssub.s32 %s34, %s41
      %s48 = sor.u32 %s46, %s47
      %p49 = scmp.eq.s32.totalorder %s48, 0
      %s51 = sadd.s32 %s50, 1
      %s52 = scalar_select %p49, %s50, %s51
      %p55 = pneg %p49
      %p56 = scmp.eq.s32.totalorder %s26, 1
      %p57 = por %p55, %p56
      %p58 = scmp.ne.s32.totalorder %s50, %s53
      %p59 = scmp.eq.s32.totalorder %s26, 0
      %p60 = por %p58, %p59
      %p61 = scmp.ne.s32.totalorder %s50, %s53
      %p62 = scmp.eq.s32.totalorder %s31, 1
      %p63 = por %p61, %p62
      %p64 = scmp.ne.s32.totalorder %s53, %s54
      %p65 = scmp.eq.s32.totalorder %s31, 0
      %p66 = por %p64, %p65
      %p67 = scmp.ne.s32.totalorder %s53, %s54
      %p68 = scmp.eq.s32.totalorder %s32, 1
      %p69 = por %p67, %p68
      %p71 = scmp.ne.s32.totalorder %s54, %s70
      %p72 = scmp.eq.s32.totalorder %s32, 0
      %p73 = por %p71, %p72
      %s74 = ssub.s32 %s33, %s45
      %p75 = scmp.eq.s32.totalorder %s74, 0
      %s77 = sadd.s32 %s76, 1
      %s78 = scalar_select %p75, %s76, %s77
      %p81 = pneg %p75
      %p82 = scmp.eq.s32.totalorder %s26, 1
      %p83 = por %p81, %p82
      %p84 = scmp.ne.s32.totalorder %s76, %s79
      %p85 = scmp.eq.s32.totalorder %s26, 0
      %p86 = por %p84, %p85
      %p87 = scmp.ne.s32.totalorder %s76, %s79
      %p88 = scmp.eq.s32.totalorder %s31, 1
      %p89 = por %p87, %p88
      %p90 = scmp.ne.s32.totalorder %s79, %s80
      %p91 = scmp.eq.s32.totalorder %s31, 0
      %p92 = por %p90, %p91
      %p93 = scmp.ne.s32.totalorder %s79, %s80
      %p94 = scmp.eq.s32.totalorder %s32, 1
      %p95 = por %p93, %p94
      %p97 = scmp.ne.s32.totalorder %s80, %s96
      %p98 = scmp.eq.s32.totalorder %s32, 0
      %p99 = por %p97, %p98
      %s100 = ssub.s32 %s33, %s45
      %p101 = scmp.eq.s32.totalorder %s100, 0
      %s103 = sadd.s32 %s102, 1
      %s104 = scalar_select %p101, %s102, %s103
      %p107 = pneg %p101
      %p108 = scmp.eq.s32.totalorder %s26, 1
      %p109 = por %p107, %p108
      %p110 = scmp.ne.s32.totalorder %s102, %s105
      %p111 = scmp.eq.s32.totalorder %s26, 0
      %p112 = por %p110, %p111
      %p113 = scmp.ne.s32.totalorder %s102, %s105
      %p114 = scmp.eq.s32.totalorder %s31, 1
      %p115 = por %p113, %p114
      %p116 = scmp.ne.s32.totalorder %s105, %s106
      %p117 = scmp.eq.s32.totalorder %s31, 0
      %p118 = por %p116, %p117
      %p119 = scmp.ne.s32.totalorder %s105, %s106
      %p120 = scmp.eq.s32.totalorder %s32, 1
      %p121 = por %p119, %p120
      %p123 = scmp.ne.s32.totalorder %s106, %s122
      %p124 = scmp.eq.s32.totalorder %s32, 0
      %p125 = por %p123, %p124
      %s126 = ssub.s32 %s33, %s45
      %s127 = ssub.s32 %s34, %s41
      %s128 = sor.u32 %s126, %s127
      %p129 = scmp.eq.s32.totalorder %s128, 0
      %s131 = sadd.s32 %s130, 1
      %s132 = scalar_select %p129, %s130, %s131
      %p135 = pneg %p129
      %p136 = scmp.eq.s32.totalorder %s26, 1
      %p137 = por %p135, %p136
      %p138 = scmp.ne.s32.totalorder %s130, %s133
      %p139 = scmp.eq.s32.totalorder %s26, 0
      %p140 = por %p138, %p139
      %p141 = scmp.ne.s32.totalorder %s130, %s133
      %p142 = scmp.eq.s32.totalorder %s31, 1
      %p143 = por %p141, %p142
      %p144 = scmp.ne.s32.totalorder %s133, %s134
      %p145 = scmp.eq.s32.totalorder %s31, 0
      %p146 = por %p144, %p145
      %p147 = scmp.ne.s32.totalorder %s133, %s134
      %p148 = scmp.eq.s32.totalorder %s32, 1
      %p149 = por %p147, %p148
      %p151 = scmp.ne.s32.totalorder %s134, %s150
      %p152 = scmp.eq.s32.totalorder %s32, 0
      %p153 = por %p151, %p152
      %s155 = sadd.s32 %s154, 1
      %p158 = scmp.eq.s32.totalorder %s26, 1
      %p159 = scmp.ne.s32.totalorder %s154, %s156
      %p160 = scmp.eq.s32.totalorder %s26, 0
      %p161 = por %p159, %p160
      %p162 = scmp.ne.s32.totalorder %s154, %s156
      %p163 = scmp.eq.s32.totalorder %s31, 1
      %p164 = por %p162, %p163
      %p165 = scmp.ne.s32.totalorder %s156, %s157
      %p166 = scmp.eq.s32.totalorder %s31, 0
      %p167 = por %p165, %p166
      %p168 = scmp.ne.s32.totalorder %s156, %s157
      %p169 = scmp.eq.s32.totalorder %s32, 1
      %p170 = por %p168, %p169
      %p172 = scmp.ne.s32.totalorder %s157, %s171
      %p173 = scmp.eq.s32.totalorder %s32, 0
      %p174 = por %p172, %p173
      %s176 = sadd.s32 %s175, 1
      %p179 = scmp.eq.s32.totalorder %s26, 1
      %p180 = scmp.ne.s32.totalorder %s175, %s177
      %p181 = scmp.eq.s32.totalorder %s26, 0
      %p182 = por %p180, %p181
      %p183 = scmp.ne.s32.totalorder %s175, %s177
      %p184 = scmp.eq.s32.totalorder %s31, 1
      %p185 = por %p183, %p184
      %p186 = scmp.ne.s32.totalorder %s177, %s178
      %p187 = scmp.eq.s32.totalorder %s31, 0
      %p188 = por %p186, %p187
      %p189 = scmp.ne.s32.totalorder %s177, %s178
      %p190 = scmp.eq.s32.totalorder %s32, 1
      %p191 = por %p189, %p190
      %p193 = scmp.ne.s32.totalorder %s178, %s192
      %p194 = scmp.eq.s32.totalorder %s32, 0
      %p195 = por %p193, %p194
      %s197 = sadd.s32 %s196, 1
      %p200 = scmp.eq.s32.totalorder %s26, 1
      %p201 = scmp.ne.s32.totalorder %s196, %s198
      %p202 = scmp.eq.s32.totalorder %s26, 0
      %p203 = por %p201, %p202
      %p204 = scmp.ne.s32.totalorder %s196, %s198
      %p205 = scmp.eq.s32.totalorder %s31, 1
      %p206 = por %p204, %p205
      %p207 = scmp.ne.s32.totalorder %s198, %s199
      %p208 = scmp.eq.s32.totalorder %s31, 0
      %p209 = por %p207, %p208
      %p210 = scmp.ne.s32.totalorder %s198, %s199
      %p211 = scmp.eq.s32.totalorder %s32, 1
      %p212 = por %p210, %p211
      %p214 = scmp.ne.s32.totalorder %s199, %s213
      %p215 = scmp.eq.s32.totalorder %s32, 0
      %p216 = por %p214, %p215
      %s218 = sadd.s32 %s217, 1
      %p221 = scmp.eq.s32.totalorder %s26, 1
      %p222 = scmp.ne.s32.totalorder %s217, %s219
      %p223 = scmp.eq.s32.totalorder %s26, 0
      %p224 = por %p222, %p223
      %p225 = scmp.ne.s32.totalorder %s217, %s219
      %p226 = scmp.eq.s32.totalorder %s31, 1
      %p227 = por %p225, %p226
      %p228 = scmp.ne.s32.totalorder %s219, %s220
      %p229 = scmp.eq.s32.totalorder %s31, 0
      %p230 = por %p228, %p229
      %p231 = scmp.ne.s32.totalorder %s219, %s220
      %p232 = scmp.eq.s32.totalorder %s32, 1
      %p233 = por %p231, %p232
      %p235 = scmp.ne.s32.totalorder %s220, %s234
      %p236 = scmp.eq.s32.totalorder %s32, 0
      %p237 = por %p235, %p236
      %s239 = sadd.s32 %s238, 1
      %p242 = scmp.eq.s32.totalorder %s26, 1
      %p243 = scmp.ne.s32.totalorder %s238, %s240
      %p244 = scmp.eq.s32.totalorder %s26, 0
      %p245 = por %p243, %p244
      %p246 = scmp.ne.s32.totalorder %s238, %s240
      %p247 = scmp.eq.s32.totalorder %s31, 1
      %p248 = por %p246, %p247
      %p249 = scmp.ne.s32.totalorder %s240, %s241
      %p250 = scmp.eq.s32.totalorder %s31, 0
      %p251 = por %p249, %p250
      %p252 = scmp.ne.s32.totalorder %s240, %s241
      %p253 = scmp.eq.s32.totalorder %s32, 1
      %p254 = por %p252, %p253
      %p256 = scmp.ne.s32.totalorder %s241, %s255
      %p257 = scmp.eq.s32.totalorder %s32, 0
      %p258 = por %p256, %p257
      %s260 = sadd.s32 %s259, 1
      %p263 = scmp.eq.s32.totalorder %s26, 1
      %p264 = scmp.ne.s32.totalorder %s259, %s261
      %p265 = scmp.eq.s32.totalorder %s26, 0
      %p266 = por %p264, %p265
      %p267 = scmp.ne.s32.totalorder %s259, %s261
      %p268 = scmp.eq.s32.totalorder %s31, 1
      %p269 = por %p267, %p268
      %p270 = scmp.ne.s32.totalorder %s261, %s262
      %p271 = scmp.eq.s32.totalorder %s31, 0
      %p272 = por %p270, %p271
      %p273 = scmp.ne.s32.totalorder %s261, %s262
      %p274 = scmp.eq.s32.totalorder %s32, 1
      %p275 = por %p273, %p274
      %p277 = scmp.ne.s32.totalorder %s262, %s276
      %p278 = scmp.eq.s32.totalorder %s32, 0
      %p279 = por %p277, %p278
      %s281 = sadd.s32 %s280, 1
      %p284 = scmp.eq.s32.totalorder %s26, 1
      %p285 = scmp.ne.s32.totalorder %s280, %s282
      %p286 = scmp.eq.s32.totalorder %s26, 0
      %p287 = por %p285, %p286
      %p288 = scmp.ne.s32.totalorder %s280, %s282
      %p289 = scmp.eq.s32.totalorder %s31, 1
      %p290 = por %p288, %p289
      %p291 = scmp.ne.s32.totalorder %s282, %s283
      %p292 = scmp.eq.s32.totalorder %s31, 0
      %p293 = por %p291, %p292
      %p294 = scmp.ne.s32.totalorder %s282, %s283
      %p295 = scmp.eq.s32.totalorder %s32, 1
      %p296 = por %p294, %p295
      %p298 = scmp.ne.s32.totalorder %s283, %s297
      %p299 = scmp.eq.s32.totalorder %s32, 0
      %p300 = por %p298, %p299
      %s302 = sadd.s32 %s301, 1
      %p305 = scmp.eq.s32.totalorder %s26, 1
      %p306 = scmp.ne.s32.totalorder %s301, %s303
      %p307 = scmp.eq.s32.totalorder %s26, 0
      %p308 = por %p306, %p307
      %p309 = scmp.ne.s32.totalorder %s301, %s303
      %p310 = scmp.eq.s32.totalorder %s31, 1
      %p311 = por %p309, %p310
      %p312 = scmp.ne.s32.totalorder %s303, %s304
      %p313 = scmp.eq.s32.totalorder %s31, 0
      %p314 = por %p312, %p313
      %p315 = scmp.ne.s32.totalorder %s303, %s304
      %p316 = scmp.eq.s32.totalorder %s32, 1
      %p317 = por %p315, %p316
      %p319 = scmp.ne.s32.totalorder %s304, %s318
      %p320 = scmp.eq.s32.totalorder %s32, 0
      %p321 = por %p319, %p320
      %s322 = ssub.s32 %s33, %s45
      %s323 = ssub.s32 %s34, %s41
      %s324 = sor.u32 %s322, %s323
      %p325 = scmp.eq.s32.totalorder %s324, 0
      %s327 = sadd.s32 %s326, 1
      %s328 = scalar_select %p325, %s326, %s327
      %p331 = pneg %p325
      %p332 = scmp.eq.s32.totalorder %s26, 1
      %p333 = por %p331, %p332
      %p334 = scmp.ne.s32.totalorder %s326, %s329
      %p335 = scmp.eq.s32.totalorder %s26, 0
      %p336 = por %p334, %p335
      %p337 = scmp.ne.s32.totalorder %s326, %s329
      %p338 = scmp.eq.s32.totalorder %s31, 1
      %p339 = por %p337, %p338
      %p340 = scmp.ne.s32.totalorder %s329, %s330
      %p341 = scmp.eq.s32.totalorder %s31, 0
      %p342 = por %p340, %p341
      %p343 = scmp.ne.s32.totalorder %s329, %s330
      %p344 = scmp.eq.s32.totalorder %s32, 1
      %p345 = por %p343, %p344
      %p347 = scmp.ne.s32.totalorder %s330, %s346
      %p348 = scmp.eq.s32.totalorder %s32, 0
      %p349 = por %p347, %p348
      %s350 = ssub.s32 %s33, %s45
      %s351 = ssub.s32 %s34, %s41
      %s352 = sor.u32 %s350, %s351
      %p353 = scmp.eq.s32.totalorder %s352, 0
      %s355 = sadd.s32 %s354, 1
      %s356 = scalar_select %p353, %s354, %s355
      %p359 = pneg %p353
      %p360 = scmp.eq.s32.totalorder %s26, 1
      %p361 = por %p359, %p360
      %p362 = scmp.ne.s32.totalorder %s354, %s357
      %p363 = scmp.eq.s32.totalorder %s26, 0
      %p364 = por %p362, %p363
      %p365 = scmp.ne.s32.totalorder %s354, %s357
      %p366 = scmp.eq.s32.totalorder %s31, 1
      %p367 = por %p365, %p366
      %p368 = scmp.ne.s32.totalorder %s357, %s358
      %p369 = scmp.eq.s32.totalorder %s31, 0
      %p370 = por %p368, %p369
      %p371 = scmp.ne.s32.totalorder %s357, %s358
      %p372 = scmp.eq.s32.totalorder %s32, 1
      %p373 = por %p371, %p372
      %p375 = scmp.ne.s32.totalorder %s358, %s374
      %p376 = scmp.eq.s32.totalorder %s32, 0
      %p377 = por %p375, %p376
      %p378 = scmp.le.s32.totalorder 1, %s26
      %p379 = scmp.lt.s32.totalorder %s26, 3
      %p380 = pnand %p378, %p379
      %p381 = pneg %p380
      // Predicated region
      $region9: #{tpu_custom_call.1} parent=5 // pred_check
        _
      $region10: #{tpu_custom_call.1} parent=5 // pred_check_branch
        %383 = sbr.rel (%p380) target = $region12
      $region11: #{tpu_custom_call.1} parent=5 // pred_region
        %s384 = ssub.s32 %s26, 1
        // Predicated region
        $region13: #{tpu_custom_call.1} parent=11 // pred_check
          %p385 = pneg %p167
        $region14: #{tpu_custom_call.1} parent=11 // pred_check_branch
          %387 = sbr.rel (%p385) target = $region16
        $region15: #{tpu_custom_call.1} parent=11 // pred_region
          _
        $region16: #{tpu_custom_call.1} parent=11 // pred_fallthru
          _
        // Predicated region
        $region17: #{tpu_custom_call.1} parent=11 // pred_check
          %p388 = pneg %p188
        $region18: #{tpu_custom_call.1} parent=11 // pred_check_branch
          %390 = sbr.rel (%p388) target = $region20
        $region19: #{tpu_custom_call.1} parent=11 // pred_region
          _
        $region20: #{tpu_custom_call.1} parent=11 // pred_fallthru
          _
        // Predicated region
        $region21: #{tpu_custom_call.1} parent=11 // pred_check
          %p391 = pneg %p209
        $region22: #{tpu_custom_call.1} parent=11 // pred_check_branch
          %393 = sbr.rel (%p391) target = $region24
        $region23: #{tpu_custom_call.1} parent=11 // pred_region
          _
        $region24: #{tpu_custom_call.1} parent=11 // pred_fallthru
          _
        // Predicated region
        $region25: #{tpu_custom_call.1} parent=11 // pred_check
          %p394 = pneg %p230
        $region26: #{tpu_custom_call.1} parent=11 // pred_check_branch
          %396 = sbr.rel (%p394) target = $region28
        $region27: #{tpu_custom_call.1} parent=11 // pred_region
          _
        $region28: #{tpu_custom_call.1} parent=11 // pred_fallthru
          _
        // Predicated region
        $region29: #{tpu_custom_call.1} parent=11 // pred_check
          %p397 = pneg %p251
        $region30: #{tpu_custom_call.1} parent=11 // pred_check_branch
          %399 = sbr.rel (%p397) target = $region32
        $region31: #{tpu_custom_call.1} parent=11 // pred_region
          _
        $region32: #{tpu_custom_call.1} parent=11 // pred_fallthru
          _
        // Predicated region
        $region33: #{tpu_custom_call.1} parent=11 // pred_check
          %p400 = pneg %p272
        $region34: #{tpu_custom_call.1} parent=11 // pred_check_branch
          %402 = sbr.rel (%p400) target = $region36
        $region35: #{tpu_custom_call.1} parent=11 // pred_region
          _
        $region36: #{tpu_custom_call.1} parent=11 // pred_fallthru
          _
        // Predicated region
        $region37: #{tpu_custom_call.1} parent=11 // pred_check
          %p403 = pneg %p293
        $region38: #{tpu_custom_call.1} parent=11 // pred_check_branch
          %405 = sbr.rel (%p403) target = $region40
        $region39: #{tpu_custom_call.1} parent=11 // pred_region
          _
        $region40: #{tpu_custom_call.1} parent=11 // pred_fallthru
          _
        // Predicated region
        $region41: #{tpu_custom_call.1} parent=11 // pred_check
          %p406 = pneg %p314
        $region42: #{tpu_custom_call.1} parent=11 // pred_check_branch
          %408 = sbr.rel (%p406) target = $region44
        $region43: #{tpu_custom_call.1} parent=11 // pred_region
          _
        $region44: #{tpu_custom_call.1} parent=11 // pred_fallthru
          _
      $region12: #{tpu_custom_call.1} parent=5 // pred_fallthru
        _
      %p409 = scmp.lt.s32.totalorder %s26, 2
      // Predicated region
      $region45: #{tpu_custom_call.1} parent=5 // pred_check
        %p410 = pneg %p409
      $region46: #{tpu_custom_call.1} parent=5 // pred_check_branch
        %412 = sbr.rel (%p410) target = $region48
      $region47: #{tpu_custom_call.1} parent=5 // pred_region
        // Predicated region
        $region49: #{tpu_custom_call.1} parent=47 // pred_check
          %p413 = pneg %p60
        $region50: #{tpu_custom_call.1} parent=47 // pred_check_branch
          %415 = sbr.rel (%p413) target = $region52
        $region51: #{tpu_custom_call.1} parent=47 // pred_region
          %p416 = scmp.lt.s32.totalorder %s33, 1
          %s417 = scalar_select %p416, %s33, 1
          %p418 = scmp.lt.s32.totalorder %s34, 0
          %s419 = scalar_select %p418, %s34, 0
          %s420 = sadd.s32 %s419, %s417
          %s421 = smul.addr %s420, 8
          %s422 = scalar_lea.vmem %s0, %s421
        $region52: #{tpu_custom_call.1} parent=47 // pred_fallthru
          _
        // Predicated region
        $region53: #{tpu_custom_call.1} parent=47 // pred_check
          %p423 = pneg %p86
        $region54: #{tpu_custom_call.1} parent=47 // pred_check_branch
          %425 = sbr.rel (%p423) target = $region56
        $region55: #{tpu_custom_call.1} parent=47 // pred_region
          %p426 = scmp.lt.s32.totalorder %s33, 1
          %s427 = scalar_select %p426, %s33, 1
          %s428 = smul.addr %s427, 8
          %s429 = scalar_lea.vmem %s1, %s428
        $region56: #{tpu_custom_call.1} parent=47 // pred_fallthru
          _
        // Predicated region
        $region57: #{tpu_custom_call.1} parent=47 // pred_check
          %p430 = pneg %p112
        $region58: #{tpu_custom_call.1} parent=47 // pred_check_branch
          %432 = sbr.rel (%p430) target = $region60
        $region59: #{tpu_custom_call.1} parent=47 // pred_region
          %p433 = scmp.lt.s32.totalorder %s33, 1
          %s434 = scalar_select %p433, %s33, 1
          %s435 = smul.addr %s434, 8
          %s436 = scalar_lea.vmem %s2, %s435
        $region60: #{tpu_custom_call.1} parent=47 // pred_fallthru
          _
        // Predicated region
        $region61: #{tpu_custom_call.1} parent=47 // pred_check
          %p437 = pneg %p140
        $region62: #{tpu_custom_call.1} parent=47 // pred_check_branch
          %439 = sbr.rel (%p437) target = $region64
        $region63: #{tpu_custom_call.1} parent=47 // pred_region
          %p440 = scmp.lt.s32.totalorder %s33, 1
          %s441 = scalar_select %p440, %s33, 1
          %p442 = scmp.lt.s32.totalorder %s34, 0
          %s443 = scalar_select %p442, %s34, 0
          %s444 = sadd.s32 %s443, %s441
          %s445 = smul.addr %s444, 2
          %s446 = scalar_lea.vmem %s3, %s445
        $region64: #{tpu_custom_call.1} parent=47 // pred_fallthru
          _
      $region48: #{tpu_custom_call.1} parent=5 // pred_fallthru
        _
      %p447 = scmp.le.s32.totalorder 1, %s26
      %p448 = scmp.lt.s32.totalorder %s26, 3
      %p449 = pnand %p447, %p448
      %p450 = pneg %p449
      // Predicated region
      $region65: #{tpu_custom_call.1} parent=5 // pred_check
        _
      $region66: #{tpu_custom_call.1} parent=5 // pred_check_branch
        %452 = sbr.rel (%p449) target = $region68
      $region67: #{tpu_custom_call.1} parent=5 // pred_region
        %s453 = ssub.s32 %s26, 1
        %p454 = scmp.lt.s32.totalorder %s35, 1
        %s455 = scalar_select %p454, %s35, 1
        %p456 = scmp.lt.s32.totalorder %s36, 0
        %s457 = scalar_select %p456, %s36, 0
        %s458 = sadd.s32 %s457, %s455
        %s459 = smul.addr %s458, 8
        %s460 = scalar_lea.vmem %s0, %s459
        %p461 = pneg %p66
        %p462 = pneg %p63
        %p463 = scmp.lt.s32.totalorder %s35, 1
        %s464 = scalar_select %p463, %s35, 1
        %s465 = smul.addr %s464, 8
        %s466 = scalar_lea.vmem %s1, %s465
        %p467 = pneg %p92
        %p468 = pneg %p89
        %p469 = scmp.lt.s32.totalorder %s35, 1
        %s470 = scalar_select %p469, %s35, 1
        %s471 = smul.addr %s470, 8
        %s472 = scalar_lea.vmem %s2, %s471
        %p473 = pneg %p118
        %p474 = pneg %p115
        %p475 = scmp.lt.s32.totalorder %s35, 1
        %s476 = scalar_select %p475, %s35, 1
        %p477 = scmp.lt.s32.totalorder %s36, 0
        %s478 = scalar_select %p477, %s36, 0
        %s479 = sadd.s32 %s478, %s476
        %s480 = smul.addr %s479, 2
        %s481 = scalar_lea.vmem %s3, %s480
        %p482 = pneg %p146
        %p483 = pneg %p143
        %p484 = pneg %p167
        %p485 = pneg %p164
        %p486 = pneg %p188
        %p487 = pneg %p185
        %p488 = pneg %p209
        %p489 = pneg %p206
        %p490 = pneg %p230
        %p491 = pneg %p227
        %p492 = pneg %p251
        %p493 = pneg %p248
        %p494 = pneg %p272
        %p495 = pneg %p269
        %p496 = pneg %p293
        %p497 = pneg %p290
        %p498 = pneg %p314
        %p499 = pneg %p311
        %p500 = pneg %p342
        %p501 = pneg %p339
        %s502 = sand.u32 %s329, 1
        %s503 = scalar_lea.sflag [#allocation5], %s502
        %s504 = sand.u32 %s329, 1
        %s505 = smul.addr %s504, 8
        %s506 = scalar_lea.vmem [#allocation4], %s505
        %p507 = pneg %p370
        %p508 = pneg %p367
        %s509 = sand.u32 %s357, 1
        %s510 = scalar_lea.sflag [#allocation7], %s509
        %s511 = sand.u32 %s357, 1
        %s512 = smul.addr %s511, 32
        %s513 = scalar_lea.vmem [#allocation6], %s512
        %p514 = scmp.lt.s32.totalorder %s35, 1
        %s515 = scalar_select %p514, %s35, 1
        %p516 = scmp.lt.s32.totalorder %s36, 0
        %s517 = scalar_select %p516, %s36, 0
        %s518 = sadd.s32 %s517, %s515
        %s519 = smul.addr %s518, 8
        %s520 = scalar_lea.vmem %s0, %s519
        %p521 = scmp.lt.s32.totalorder %s35, 1
        %s522 = scalar_select %p521, %s35, 1
        %s523 = smul.addr %s522, 8
        %s524 = scalar_lea.vmem %s1, %s523
        %p525 = scmp.lt.s32.totalorder %s35, 1
        %s526 = scalar_select %p525, %s35, 1
        %s527 = smul.addr %s526, 8
        %s528 = scalar_lea.vmem %s2, %s527
        %p529 = scmp.lt.s32.totalorder %s35, 1
        %s530 = scalar_select %p529, %s35, 1
        %p531 = scmp.lt.s32.totalorder %s36, 0
        %s532 = scalar_select %p531, %s36, 0
        %s533 = sadd.s32 %s532, %s530
        %s534 = smul.addr %s533, 2
        %s535 = scalar_lea.vmem %s3, %s534
        %p536 = scmp.eq.s32.totalorder %s36, 0
        // Predicated region
        $region69: #{tpu_custom_call.1} parent=67 // pred_check
          %p537 = pneg %p536
        $region70: #{tpu_custom_call.1} parent=67 // pred_check_branch
          %539 = sbr.rel (%p537) target = $region72
        $region71: #{tpu_custom_call.1} parent=67 // pred_region
          %v540 = vld [vmem:[%s524] sm:$0xff]
          %v541 = vld [vmem:[%s6] sm:$0xff]
          %v542 = vld [vmem:[%s6 + $0x8] sm:$0xff]
          %v543 = vld [vmem:[%s6 + $0x10] sm:$0xff]
          %v544 = vld [vmem:[%s6 + $0x18] sm:$0xff]
          %v545 = vld [vmem:[%s6 + $0x20] sm:$0xff]
          %v546 = vld [vmem:[%s6 + $0x28] sm:$0xff]
          %v547 = vld [vmem:[%s6 + $0x30] sm:$0xff]
          %v548 = vld [vmem:[%s6 + $0x38] sm:$0xff]
          %v549 = vld [vmem:[%s6 + $0x40] sm:$0xff]
          %v550 = vld [vmem:[%s6 + $0x48] sm:$0xff]
          %v551 = vld [vmem:[%s6 + $0x50] sm:$0xff]
          %v552 = vld [vmem:[%s6 + $0x58] sm:$0xff]
          %v553 = vld [vmem:[%s6 + $0x60] sm:$0xff]
          %v554 = vld [vmem:[%s6 + $0x68] sm:$0xff]
          %v555 = vld [vmem:[%s6 + $0x70] sm:$0xff]
          %v556 = vld [vmem:[%s6 + $0x78] sm:$0xff]
          %v557 = vld [vmem:[%s7] sm:$0x1]
          %v558 = vld [vmem:[%s7 + $0x1] sm:$0x1]
          %v559 = vld [vmem:[%s7 + $0x2] sm:$0x1]
          %v560 = vld [vmem:[%s7 + $0x3] sm:$0x1]
          %v565 = vlaneseq
          %v566 = vshrl.u32 %v565, 7
          %v567 = vsub.s32 0, %v566
          %v568 = vrot.slane %v557, %v567
          %v569 = vlaneseq
          %v570 = vshrl.u32 %v569, 7
          %v571 = vsub.s32 0, %v570
          %v572 = vrot.slane %v558, %v571
          %v573 = vlaneseq
          %v574 = vshrl.u32 %v573, 7
          %v575 = vsub.s32 0, %v574
          %v576 = vrot.slane %v559, %v575
          %v577 = vlaneseq
          %v578 = vshrl.u32 %v577, 7
          %v579 = vsub.s32 0, %v578
          %v580 = vrot.slane %v560, %v579
          %vm585 = vcmask 261120
          %v587 = vsel %vm585, %v540, 0
          %589 = vmatprep.subr.mxu0 0.0
          %590 = vmatpush1.msra.mxu0 0.0
          %591 = vmatprep.subr.mxu0 0.0
          %592 = vmatpush1.msra.mxu0 0.0
          %593 = vmatprep.subr.mxu0 0.0
          %594 = vmatpush1.msra.mxu0 0.0
          %595 = vmatprep.subr.mxu0 0.0
          %596 = vmatpush1.msra.mxu0 0.0
          %597 = vmatprep.subr.mxu0 0.0
          %598 = vmatpush1.msra.mxu0 0.0
          %599 = vmatprep.subr.mxu0 0.0
          %600 = vmatpush1.msra.mxu0 0.0
          %601 = vmatprep.subr.mxu0 0.0
          %602 = vmatpush1.msra.mxu0 0.0
          %603 = vmatprep.subr.mxu0 0.0
          %604 = vmatpush1.msra.mxu0 0.0
          %605 = vmatprep.subr.mxu0 0.0
          %606 = vmatpush1.msra.mxu0 0.0
          %607 = vmatprep.subr.mxu0 0.0
          %608 = vmatpush1.msra.mxu0 0.0
          %609 = vmatprep.subr.mxu0 0.0
          %610 = vmatpush1.msra.mxu0 0.0
          %611 = vmatprep.subr.mxu0 0.0
          %612 = vmatpush1.msra.mxu0 0.0
          %613 = vmatprep.subr.mxu0 0.0
          %614 = vmatpush1.msra.mxu0 %v544
          %615 = vmatprep.subr.mxu0 0.0
          %616 = vmatpush1.msra.mxu0 %v543
          %617 = vmatprep.subr.mxu0 0.0
          %618 = vmatpush1.msra.mxu0 %v542
          %619 = vmatprep.subr.mxu0 0.0
          %620 = vmatpush1.msra.mxu0 %v541
          %621 = vmatprep.subr.mxu0 0.0
          %622 = vmatpush2.msra.mxu0 0.0
          %623 = vmatprep.subr.mxu0 0.0
          %624 = vmatpush2.msra.mxu0 0.0
          %625 = vmatprep.subr.mxu0 0.0
          %626 = vmatpush2.msra.mxu0 0.0
          %627 = vmatprep.subr.mxu0 0.0
          %628 = vmatpush2.msra.mxu0 0.0
          %629 = vmatprep.subr.mxu0 0.0
          %630 = vmatpush2.msra.mxu0 0.0
          %631 = vmatprep.subr.mxu0 0.0
          %632 = vmatpush2.msra.mxu0 0.0
          %633 = vmatprep.subr.mxu0 0.0
          %634 = vmatpush2.msra.mxu0 0.0
          %635 = vmatprep.subr.mxu0 0.0
          %636 = vmatpush2.msra.mxu0 0.0
          %637 = vmatprep.subr.mxu0 0.0
          %638 = vmatpush2.msra.mxu0 0.0
          %639 = vmatprep.subr.mxu0 0.0
          %640 = vmatpush2.msra.mxu0 0.0
          %641 = vmatprep.subr.mxu0 0.0
          %642 = vmatpush2.msra.mxu0 0.0
          %643 = vmatprep.subr.mxu0 0.0
          %644 = vmatpush2.msra.mxu0 0.0
          %645 = vmatprep.subr.mxu0 0.0
          %646 = vmatpush2.msra.mxu0 0.0
          %647 = vmatprep.subr.mxu0 0.0
          %648 = vmatpush2.msra.mxu0 0.0
          %649 = vmatprep.subr.mxu0 0.0
          %650 = vmatpush2.msra.mxu0 0.0
          %651 = vmatprep.subr.mxu0 0.0
          %652 = vmatpush2.msra.mxu0 0.0
          %653 = vmatprep.mubr.f32.mxu0 0.0
          %654 = vmatmul.mubr.f32.gmra.mxu0 %v587
          %v655 = vpop.f32.mrf.mxu0
          %v656 = vadd.f32 %v568, %v655
          %v657 = vpop.f32.mrf.mxu0
          %658 = vdwg.mxu0
          %659 = vmatprep.subr.mxu0 0.0
          %660 = vmatpush1.msra.mxu0 0.0
          %661 = vmatprep.subr.mxu0 0.0
          %662 = vmatpush1.msra.mxu0 0.0
          %663 = vmatprep.subr.mxu0 0.0
          %664 = vmatpush1.msra.mxu0 0.0
          %665 = vmatprep.subr.mxu0 0.0
          %666 = vmatpush1.msra.mxu0 0.0
          %667 = vmatprep.subr.mxu0 0.0
          %668 = vmatpush1.msra.mxu0 0.0
          %669 = vmatprep.subr.mxu0 0.0
          %670 = vmatpush1.msra.mxu0 0.0
          %671 = vmatprep.subr.mxu0 0.0
          %672 = vmatpush1.msra.mxu0 0.0
          %673 = vmatprep.subr.mxu0 0.0
          %674 = vmatpush1.msra.mxu0 0.0
          %675 = vmatprep.subr.mxu0 0.0
          %676 = vmatpush1.msra.mxu0 0.0
          %677 = vmatprep.subr.mxu0 0.0
          %678 = vmatpush1.msra.mxu0 0.0
          %679 = vmatprep.subr.mxu0 0.0
          %680 = vmatpush1.msra.mxu0 0.0
          %681 = vmatprep.subr.mxu0 0.0
          %682 = vmatpush1.msra.mxu0 0.0
          %683 = vmatprep.subr.mxu0 0.0
          %684 = vmatpush1.msra.mxu0 %v548
          %685 = vmatprep.subr.mxu0 0.0
          %686 = vmatpush1.msra.mxu0 %v547
          %687 = vmatprep.subr.mxu0 0.0
          %688 = vmatpush1.msra.mxu0 %v546
          %689 = vmatprep.subr.mxu0 0.0
          %690 = vmatpush1.msra.mxu0 %v545
          %691 = vmatprep.subr.mxu0 0.0
          %692 = vmatpush2.msra.mxu0 0.0
          %693 = vmatprep.subr.mxu0 0.0
          %694 = vmatpush2.msra.mxu0 0.0
          %695 = vmatprep.subr.mxu0 0.0
          %696 = vmatpush2.msra.mxu0 0.0
          %697 = vmatprep.subr.mxu0 0.0
          %698 = vmatpush2.msra.mxu0 0.0
          %699 = vmatprep.subr.mxu0 0.0
          %700 = vmatpush2.msra.mxu0 0.0
          %701 = vmatprep.subr.mxu0 0.0
          %702 = vmatpush2.msra.mxu0 0.0
          %703 = vmatprep.subr.mxu0 0.0
          %704 = vmatpush2.msra.mxu0 0.0
          %705 = vmatprep.subr.mxu0 0.0
          %706 = vmatpush2.msra.mxu0 0.0
          %707 = vmatprep.subr.mxu0 0.0
          %708 = vmatpush2.msra.mxu0 0.0
          %709 = vmatprep.subr.mxu0 0.0
          %710 = vmatpush2.msra.mxu0 0.0
          %711 = vmatprep.subr.mxu0 0.0
          %712 = vmatpush2.msra.mxu0 0.0
          %713 = vmatprep.subr.mxu0 0.0
          %714 = vmatpush2.msra.mxu0 0.0
          %715 = vmatprep.subr.mxu0 0.0
          %716 = vmatpush2.msra.mxu0 0.0
          %717 = vmatprep.subr.mxu0 0.0
          %718 = vmatpush2.msra.mxu0 0.0
          %719 = vmatprep.subr.mxu0 0.0
          %720 = vmatpush2.msra.mxu0 0.0
          %721 = vmatprep.subr.mxu0 0.0
          %722 = vmatpush2.msra.mxu0 0.0
          %723 = vmatprep.mubr.f32.mxu0 0.0
          %724 = vmatmul.mubr.f32.gmra.mxu0 %v587
          %v725 = vpop.f32.mrf.mxu0
          %v726 = vadd.f32 %v572, %v725
          %v727 = vpop.f32.mrf.mxu0
          %728 = vdwg.mxu0
          %729 = vmatprep.subr.mxu0 0.0
          %730 = vmatpush1.msra.mxu0 0.0
          %731 = vmatprep.subr.mxu0 0.0
          %732 = vmatpush1.msra.mxu0 0.0
          %733 = vmatprep.subr.mxu0 0.0
          %734 = vmatpush1.msra.mxu0 0.0
          %735 = vmatprep.subr.mxu0 0.0
          %736 = vmatpush1.msra.mxu0 0.0
          %737 = vmatprep.subr.mxu0 0.0
          %738 = vmatpush1.msra.mxu0 0.0
          %739 = vmatprep.subr.mxu0 0.0
          %740 = vmatpush1.msra.mxu0 0.0
          %741 = vmatprep.subr.mxu0 0.0
          %742 = vmatpush1.msra.mxu0 0.0
          %743 = vmatprep.subr.mxu0 0.0
          %744 = vmatpush1.msra.mxu0 0.0
          %745 = vmatprep.subr.mxu0 0.0
          %746 = vmatpush1.msra.mxu0 0.0
          %747 = vmatprep.subr.mxu0 0.0
          %748 = vmatpush1.msra.mxu0 0.0
          %749 = vmatprep.subr.mxu0 0.0
          %750 = vmatpush1.msra.mxu0 0.0
          %751 = vmatprep.subr.mxu0 0.0
          %752 = vmatpush1.msra.mxu0 0.0
          %753 = vmatprep.subr.mxu0 0.0
          %754 = vmatpush1.msra.mxu0 %v552
          %755 = vmatprep.subr.mxu0 0.0
          %756 = vmatpush1.msra.mxu0 %v551
          %757 = vmatprep.subr.mxu0 0.0
          %758 = vmatpush1.msra.mxu0 %v550
          %759 = vmatprep.subr.mxu0 0.0
          %760 = vmatpush1.msra.mxu0 %v549
          %761 = vmatprep.subr.mxu0 0.0
          %762 = vmatpush2.msra.mxu0 0.0
          %763 = vmatprep.subr.mxu0 0.0
          %764 = vmatpush2.msra.mxu0 0.0
          %765 = vmatprep.subr.mxu0 0.0
          %766 = vmatpush2.msra.mxu0 0.0
          %767 = vmatprep.subr.mxu0 0.0
          %768 = vmatpush2.msra.mxu0 0.0
          %769 = vmatprep.subr.mxu0 0.0
          %770 = vmatpush2.msra.mxu0 0.0
          %771 = vmatprep.subr.mxu0 0.0
          %772 = vmatpush2.msra.mxu0 0.0
          %773 = vmatprep.subr.mxu0 0.0
          %774 = vmatpush2.msra.mxu0 0.0
          %775 = vmatprep.subr.mxu0 0.0
          %776 = vmatpush2.msra.mxu0 0.0
          %777 = vmatprep.subr.mxu0 0.0
          %778 = vmatpush2.msra.mxu0 0.0
          %779 = vmatprep.subr.mxu0 0.0
          %780 = vmatpush2.msra.mxu0 0.0
          %781 = vmatprep.subr.mxu0 0.0
          %782 = vmatpush2.msra.mxu0 0.0
          %783 = vmatprep.subr.mxu0 0.0
          %784 = vmatpush2.msra.mxu0 0.0
          %785 = vmatprep.subr.mxu0 0.0
          %786 = vmatpush2.msra.mxu0 0.0
          %787 = vmatprep.subr.mxu0 0.0
          %788 = vmatpush2.msra.mxu0 0.0
          %789 = vmatprep.subr.mxu0 0.0
          %790 = vmatpush2.msra.mxu0 0.0
          %791 = vmatprep.subr.mxu0 0.0
          %792 = vmatpush2.msra.mxu0 0.0
          %793 = vmatprep.mubr.f32.mxu0 0.0
          %794 = vmatmul.mubr.f32.gmra.mxu0 %v587
          %v795 = vpop.f32.mrf.mxu0
          %v796 = vadd.f32 %v576, %v795
          %v797 = vpop.f32.mrf.mxu0
          %798 = vdwg.mxu0
          %799 = vmatprep.subr.mxu0 0.0
          %800 = vmatpush1.msra.mxu0 0.0
          %801 = vmatprep.subr.mxu0 0.0
          %802 = vmatpush1.msra.mxu0 0.0
          %803 = vmatprep.subr.mxu0 0.0
          %804 = vmatpush1.msra.mxu0 0.0
          %805 = vmatprep.subr.mxu0 0.0
          %806 = vmatpush1.msra.mxu0 0.0
          %807 = vmatprep.subr.mxu0 0.0
          %808 = vmatpush1.msra.mxu0 0.0
          %809 = vmatprep.subr.mxu0 0.0
          %810 = vmatpush1.msra.mxu0 0.0
          %811 = vmatprep.subr.mxu0 0.0
          %812 = vmatpush1.msra.mxu0 0.0
          %813 = vmatprep.subr.mxu0 0.0
          %814 = vmatpush1.msra.mxu0 0.0
          %815 = vmatprep.subr.mxu0 0.0
          %816 = vmatpush1.msra.mxu0 0.0
          %817 = vmatprep.subr.mxu0 0.0
          %818 = vmatpush1.msra.mxu0 0.0
          %819 = vmatprep.subr.mxu0 0.0
          %820 = vmatpush1.msra.mxu0 0.0
          %821 = vmatprep.subr.mxu0 0.0
          %822 = vmatpush1.msra.mxu0 0.0
          %823 = vmatprep.subr.mxu0 0.0
          %824 = vmatpush1.msra.mxu0 %v556
          %825 = vmatprep.subr.mxu0 0.0
          %826 = vmatpush1.msra.mxu0 %v555
          %827 = vmatprep.subr.mxu0 0.0
          %828 = vmatpush1.msra.mxu0 %v554
          %829 = vmatprep.subr.mxu0 0.0
          %830 = vmatpush1.msra.mxu0 %v553
          %831 = vmatprep.subr.mxu0 0.0
          %832 = vmatpush2.msra.mxu0 0.0
          %833 = vmatprep.subr.mxu0 0.0
          %834 = vmatpush2.msra.mxu0 0.0
          %835 = vmatprep.subr.mxu0 0.0
          %836 = vmatpush2.msra.mxu0 0.0
          %837 = vmatprep.subr.mxu0 0.0
          %838 = vmatpush2.msra.mxu0 0.0
          %839 = vmatprep.subr.mxu0 0.0
          %840 = vmatpush2.msra.mxu0 0.0
          %841 = vmatprep.subr.mxu0 0.0
          %842 = vmatpush2.msra.mxu0 0.0
          %843 = vmatprep.subr.mxu0 0.0
          %844 = vmatpush2.msra.mxu0 0.0
          %845 = vmatprep.subr.mxu0 0.0
          %846 = vmatpush2.msra.mxu0 0.0
          %847 = vmatprep.subr.mxu0 0.0
          %848 = vmatpush2.msra.mxu0 0.0
          %849 = vmatprep.subr.mxu0 0.0
          %850 = vmatpush2.msra.mxu0 0.0
          %851 = vmatprep.subr.mxu0 0.0
          %852 = vmatpush2.msra.mxu0 0.0
          %853 = vmatprep.subr.mxu0 0.0
          %854 = vmatpush2.msra.mxu0 0.0
          %855 = vmatprep.subr.mxu0 0.0
          %856 = vmatpush2.msra.mxu0 0.0
          %857 = vmatprep.subr.mxu0 0.0
          %858 = vmatpush2.msra.mxu0 0.0
          %859 = vmatprep.subr.mxu0 0.0
          %860 = vmatpush2.msra.mxu0 0.0
          %861 = vmatprep.subr.mxu0 0.0
          %862 = vmatpush2.msra.mxu0 0.0
          %863 = vmatprep.mubr.f32.mxu0 0.0
          %864 = vmatmul.mubr.f32.gmra.mxu0 %v587
          %v865 = vpop.f32.mrf.mxu0
          %v866 = vadd.f32 %v580, %v865
          %v867 = vpop.f32.mrf.mxu0
          %868 = vdwg.mxu0
          %vm869 = vcmask 64512
          %870 = vst.msk [vmem:[#allocation2] sm:$0xff] %vm869, %v656
          %871 = vst.msk [vmem:[#allocation2 + $0x8] sm:$0xff] %vm869, %v726
          %872 = vst.msk [vmem:[#allocation2 + $0x10] sm:$0xff] %vm869, %v796
          %873 = vst.msk [vmem:[#allocation2 + $0x18] sm:$0xff] %vm869, %v866
          %v874 = vld [vmem:[%s528] sm:$0xff]
          %v875 = vld [vmem:[%s8] sm:$0xff]
          %v876 = vld [vmem:[%s8 + $0x8] sm:$0xff]
          %v877 = vld [vmem:[%s8 + $0x10] sm:$0xff]
          %v878 = vld [vmem:[%s8 + $0x18] sm:$0xff]
          %v879 = vld [vmem:[%s8 + $0x20] sm:$0xff]
          %v880 = vld [vmem:[%s8 + $0x28] sm:$0xff]
          %v881 = vld [vmem:[%s8 + $0x30] sm:$0xff]
          %v882 = vld [vmem:[%s8 + $0x38] sm:$0xff]
          %v883 = vld [vmem:[%s8 + $0x40] sm:$0xff]
          %v884 = vld [vmem:[%s8 + $0x48] sm:$0xff]
          %v885 = vld [vmem:[%s8 + $0x50] sm:$0xff]
          %v886 = vld [vmem:[%s8 + $0x58] sm:$0xff]
          %v887 = vld [vmem:[%s8 + $0x60] sm:$0xff]
          %v888 = vld [vmem:[%s8 + $0x68] sm:$0xff]
          %v889 = vld [vmem:[%s8 + $0x70] sm:$0xff]
          %v890 = vld [vmem:[%s8 + $0x78] sm:$0xff]
          %v891 = vld [vmem:[%s9] sm:$0x1]
          %v892 = vld [vmem:[%s9 + $0x1] sm:$0x1]
          %v893 = vld [vmem:[%s9 + $0x2] sm:$0x1]
          %v894 = vld [vmem:[%s9 + $0x3] sm:$0x1]
          %v899 = vlaneseq
          %v900 = vshrl.u32 %v899, 7
          %v901 = vsub.s32 0, %v900
          %v902 = vrot.slane %v891, %v901
          %v903 = vlaneseq
          %v904 = vshrl.u32 %v903, 7
          %v905 = vsub.s32 0, %v904
          %v906 = vrot.slane %v892, %v905
          %v907 = vlaneseq
          %v908 = vshrl.u32 %v907, 7
          %v909 = vsub.s32 0, %v908
          %v910 = vrot.slane %v893, %v909
          %v911 = vlaneseq
          %v912 = vshrl.u32 %v911, 7
          %v913 = vsub.s32 0, %v912
          %v914 = vrot.slane %v894, %v913
          %v920 = vsel %vm585, %v874, 0
          %922 = vmatprep.subr.mxu0 0.0
          %923 = vmatpush1.msra.mxu0 0.0
          %924 = vmatprep.subr.mxu0 0.0
          %925 = vmatpush1.msra.mxu0 0.0
          %926 = vmatprep.subr.mxu0 0.0
          %927 = vmatpush1.msra.mxu0 0.0
          %928 = vmatprep.subr.mxu0 0.0
          %929 = vmatpush1.msra.mxu0 0.0
          %930 = vmatprep.subr.mxu0 0.0
          %931 = vmatpush1.msra.mxu0 0.0
          %932 = vmatprep.subr.mxu0 0.0
          %933 = vmatpush1.msra.mxu0 0.0
          %934 = vmatprep.subr.mxu0 0.0
          %935 = vmatpush1.msra.mxu0 0.0
          %936 = vmatprep.subr.mxu0 0.0
          %937 = vmatpush1.msra.mxu0 0.0
          %938 = vmatprep.subr.mxu0 0.0
          %939 = vmatpush1.msra.mxu0 0.0
          %940 = vmatprep.subr.mxu0 0.0
          %941 = vmatpush1.msra.mxu0 0.0
          %942 = vmatprep.subr.mxu0 0.0
          %943 = vmatpush1.msra.mxu0 0.0
          %944 = vmatprep.subr.mxu0 0.0
          %945 = vmatpush1.msra.mxu0 0.0
          %946 = vmatprep.subr.mxu0 0.0
          %947 = vmatpush1.msra.mxu0 %v878
          %948 = vmatprep.subr.mxu0 0.0
          %949 = vmatpush1.msra.mxu0 %v877
          %950 = vmatprep.subr.mxu0 0.0
          %951 = vmatpush1.msra.mxu0 %v876
          %952 = vmatprep.subr.mxu0 0.0
          %953 = vmatpush1.msra.mxu0 %v875
          %954 = vmatprep.subr.mxu0 0.0
          %955 = vmatpush2.msra.mxu0 0.0
          %956 = vmatprep.subr.mxu0 0.0
          %957 = vmatpush2.msra.mxu0 0.0
          %958 = vmatprep.subr.mxu0 0.0
          %959 = vmatpush2.msra.mxu0 0.0
          %960 = vmatprep.subr.mxu0 0.0
          %961 = vmatpush2.msra.mxu0 0.0
          %962 = vmatprep.subr.mxu0 0.0
          %963 = vmatpush2.msra.mxu0 0.0
          %964 = vmatprep.subr.mxu0 0.0
          %965 = vmatpush2.msra.mxu0 0.0
          %966 = vmatprep.subr.mxu0 0.0
          %967 = vmatpush2.msra.mxu0 0.0
          %968 = vmatprep.subr.mxu0 0.0
          %969 = vmatpush2.msra.mxu0 0.0
          %970 = vmatprep.subr.mxu0 0.0
          %971 = vmatpush2.msra.mxu0 0.0
          %972 = vmatprep.subr.mxu0 0.0
          %973 = vmatpush2.msra.mxu0 0.0
          %974 = vmatprep.subr.mxu0 0.0
          %975 = vmatpush2.msra.mxu0 0.0
          %976 = vmatprep.subr.mxu0 0.0
          %977 = vmatpush2.msra.mxu0 0.0
          %978 = vmatprep.subr.mxu0 0.0
          %979 = vmatpush2.msra.mxu0 0.0
          %980 = vmatprep.subr.mxu0 0.0
          %981 = vmatpush2.msra.mxu0 0.0
          %982 = vmatprep.subr.mxu0 0.0
          %983 = vmatpush2.msra.mxu0 0.0
          %984 = vmatprep.subr.mxu0 0.0
          %985 = vmatpush2.msra.mxu0 0.0
          %986 = vmatprep.mubr.f32.mxu0 0.0
          %987 = vmatmul.mubr.f32.gmra.mxu0 %v920
          %v988 = vpop.f32.mrf.mxu0
          %v989 = vadd.f32 %v902, %v988
          %v990 = vpop.f32.mrf.mxu0
          %991 = vdwg.mxu0
          %992 = vmatprep.subr.mxu0 0.0
          %993 = vmatpush1.msra.mxu0 0.0
          %994 = vmatprep.subr.mxu0 0.0
          %995 = vmatpush1.msra.mxu0 0.0
          %996 = vmatprep.subr.mxu0 0.0
          %997 = vmatpush1.msra.mxu0 0.0
          %998 = vmatprep.subr.mxu0 0.0
          %999 = vmatpush1.msra.mxu0 0.0
          %1000 = vmatprep.subr.mxu0 0.0
          %1001 = vmatpush1.msra.mxu0 0.0
          %1002 = vmatprep.subr.mxu0 0.0
          %1003 = vmatpush1.msra.mxu0 0.0
          %1004 = vmatprep.subr.mxu0 0.0
          %1005 = vmatpush1.msra.mxu0 0.0
          %1006 = vmatprep.subr.mxu0 0.0
          %1007 = vmatpush1.msra.mxu0 0.0
          %1008 = vmatprep.subr.mxu0 0.0
          %1009 = vmatpush1.msra.mxu0 0.0
          %1010 = vmatprep.subr.mxu0 0.0
          %1011 = vmatpush1.msra.mxu0 0.0
          %1012 = vmatprep.subr.mxu0 0.0
          %1013 = vmatpush1.msra.mxu0 0.0
          %1014 = vmatprep.subr.mxu0 0.0
          %1015 = vmatpush1.msra.mxu0 0.0
          %1016 = vmatprep.subr.mxu0 0.0
          %1017 = vmatpush1.msra.mxu0 %v882
          %1018 = vmatprep.subr.mxu0 0.0
          %1019 = vmatpush1.msra.mxu0 %v881
          %1020 = vmatprep.subr.mxu0 0.0
          %1021 = vmatpush1.msra.mxu0 %v880
          %1022 = vmatprep.subr.mxu0 0.0
          %1023 = vmatpush1.msra.mxu0 %v879
          %1024 = vmatprep.subr.mxu0 0.0
          %1025 = vmatpush2.msra.mxu0 0.0
          %1026 = vmatprep.subr.mxu0 0.0
          %1027 = vmatpush2.msra.mxu0 0.0
          %1028 = vmatprep.subr.mxu0 0.0
          %1029 = vmatpush2.msra.mxu0 0.0
          %1030 = vmatprep.subr.mxu0 0.0
          %1031 = vmatpush2.msra.mxu0 0.0
          %1032 = vmatprep.subr.mxu0 0.0
          %1033 = vmatpush2.msra.mxu0 0.0
          %1034 = vmatprep.subr.mxu0 0.0
          %1035 = vmatpush2.msra.mxu0 0.0
          %1036 = vmatprep.subr.mxu0 0.0
          %1037 = vmatpush2.msra.mxu0 0.0
          %1038 = vmatprep.subr.mxu0 0.0
          %1039 = vmatpush2.msra.mxu0 0.0
          %1040 = vmatprep.subr.mxu0 0.0
          %1041 = vmatpush2.msra.mxu0 0.0
          %1042 = vmatprep.subr.mxu0 0.0
          %1043 = vmatpush2.msra.mxu0 0.0
          %1044 = vmatprep.subr.mxu0 0.0
          %1045 = vmatpush2.msra.mxu0 0.0
          %1046 = vmatprep.subr.mxu0 0.0
          %1047 = vmatpush2.msra.mxu0 0.0
          %1048 = vmatprep.subr.mxu0 0.0
          %1049 = vmatpush2.msra.mxu0 0.0
          %1050 = vmatprep.subr.mxu0 0.0
          %1051 = vmatpush2.msra.mxu0 0.0
          %1052 = vmatprep.subr.mxu0 0.0
          %1053 = vmatpush2.msra.mxu0 0.0
          %1054 = vmatprep.subr.mxu0 0.0
          %1055 = vmatpush2.msra.mxu0 0.0
          %1056 = vmatprep.mubr.f32.mxu0 0.0
          %1057 = vmatmul.mubr.f32.gmra.mxu0 %v920
          %v1058 = vpop.f32.mrf.mxu0
          %v1059 = vadd.f32 %v906, %v1058
          %v1060 = vpop.f32.mrf.mxu0
          %1061 = vdwg.mxu0
          %1062 = vmatprep.subr.mxu0 0.0
          %1063 = vmatpush1.msra.mxu0 0.0
          %1064 = vmatprep.subr.mxu0 0.0
          %1065 = vmatpush1.msra.mxu0 0.0
          %1066 = vmatprep.subr.mxu0 0.0
          %1067 = vmatpush1.msra.mxu0 0.0
          %1068 = vmatprep.subr.mxu0 0.0
          %1069 = vmatpush1.msra.mxu0 0.0
          %1070 = vmatprep.subr.mxu0 0.0
          %1071 = vmatpush1.msra.mxu0 0.0
          %1072 = vmatprep.subr.mxu0 0.0
          %1073 = vmatpush1.msra.mxu0 0.0
          %1074 = vmatprep.subr.mxu0 0.0
          %1075 = vmatpush1.msra.mxu0 0.0
          %1076 = vmatprep.subr.mxu0 0.0
          %1077 = vmatpush1.msra.mxu0 0.0
          %1078 = vmatprep.subr.mxu0 0.0
          %1079 = vmatpush1.msra.mxu0 0.0
          %1080 = vmatprep.subr.mxu0 0.0
          %1081 = vmatpush1.msra.mxu0 0.0
          %1082 = vmatprep.subr.mxu0 0.0
          %1083 = vmatpush1.msra.mxu0 0.0
          %1084 = vmatprep.subr.mxu0 0.0
          %1085 = vmatpush1.msra.mxu0 0.0
          %1086 = vmatprep.subr.mxu0 0.0
          %1087 = vmatpush1.msra.mxu0 %v886
          %1088 = vmatprep.subr.mxu0 0.0
          %1089 = vmatpush1.msra.mxu0 %v885
          %1090 = vmatprep.subr.mxu0 0.0
          %1091 = vmatpush1.msra.mxu0 %v884
          %1092 = vmatprep.subr.mxu0 0.0
          %1093 = vmatpush1.msra.mxu0 %v883
          %1094 = vmatprep.subr.mxu0 0.0
          %1095 = vmatpush2.msra.mxu0 0.0
          %1096 = vmatprep.subr.mxu0 0.0
          %1097 = vmatpush2.msra.mxu0 0.0
          %1098 = vmatprep.subr.mxu0 0.0
          %1099 = vmatpush2.msra.mxu0 0.0
          %1100 = vmatprep.subr.mxu0 0.0
          %1101 = vmatpush2.msra.mxu0 0.0
          %1102 = vmatprep.subr.mxu0 0.0
          %1103 = vmatpush2.msra.mxu0 0.0
          %1104 = vmatprep.subr.mxu0 0.0
          %1105 = vmatpush2.msra.mxu0 0.0
          %1106 = vmatprep.subr.mxu0 0.0
          %1107 = vmatpush2.msra.mxu0 0.0
          %1108 = vmatprep.subr.mxu0 0.0
          %1109 = vmatpush2.msra.mxu0 0.0
          %1110 = vmatprep.subr.mxu0 0.0
          %1111 = vmatpush2.msra.mxu0 0.0
          %1112 = vmatprep.subr.mxu0 0.0
          %1113 = vmatpush2.msra.mxu0 0.0
          %1114 = vmatprep.subr.mxu0 0.0
          %1115 = vmatpush2.msra.mxu0 0.0
          %1116 = vmatprep.subr.mxu0 0.0
          %1117 = vmatpush2.msra.mxu0 0.0
          %1118 = vmatprep.subr.mxu0 0.0
          %1119 = vmatpush2.msra.mxu0 0.0
          %1120 = vmatprep.subr.mxu0 0.0
          %1121 = vmatpush2.msra.mxu0 0.0
          %1122 = vmatprep.subr.mxu0 0.0
          %1123 = vmatpush2.msra.mxu0 0.0
          %1124 = vmatprep.subr.mxu0 0.0
          %1125 = vmatpush2.msra.mxu0 0.0
          %1126 = vmatprep.mubr.f32.mxu0 0.0
          %1127 = vmatmul.mubr.f32.gmra.mxu0 %v920
          %v1128 = vpop.f32.mrf.mxu0
          %v1129 = vadd.f32 %v910, %v1128
          %v1130 = vpop.f32.mrf.mxu0
          %1131 = vdwg.mxu0
          %1132 = vmatprep.subr.mxu0 0.0
          %1133 = vmatpush1.msra.mxu0 0.0
          %1134 = vmatprep.subr.mxu0 0.0
          %1135 = vmatpush1.msra.mxu0 0.0
          %1136 = vmatprep.subr.mxu0 0.0
          %1137 = vmatpush1.msra.mxu0 0.0
          %1138 = vmatprep.subr.mxu0 0.0
          %1139 = vmatpush1.msra.mxu0 0.0
          %1140 = vmatprep.subr.mxu0 0.0
          %1141 = vmatpush1.msra.mxu0 0.0
          %1142 = vmatprep.subr.mxu0 0.0
          %1143 = vmatpush1.msra.mxu0 0.0
          %1144 = vmatprep.subr.mxu0 0.0
          %1145 = vmatpush1.msra.mxu0 0.0
          %1146 = vmatprep.subr.mxu0 0.0
          %1147 = vmatpush1.msra.mxu0 0.0
          %1148 = vmatprep.subr.mxu0 0.0
          %1149 = vmatpush1.msra.mxu0 0.0
          %1150 = vmatprep.subr.mxu0 0.0
          %1151 = vmatpush1.msra.mxu0 0.0
          %1152 = vmatprep.subr.mxu0 0.0
          %1153 = vmatpush1.msra.mxu0 0.0
          %1154 = vmatprep.subr.mxu0 0.0
          %1155 = vmatpush1.msra.mxu0 0.0
          %1156 = vmatprep.subr.mxu0 0.0
          %1157 = vmatpush1.msra.mxu0 %v890
          %1158 = vmatprep.subr.mxu0 0.0
          %1159 = vmatpush1.msra.mxu0 %v889
          %1160 = vmatprep.subr.mxu0 0.0
          %1161 = vmatpush1.msra.mxu0 %v888
          %1162 = vmatprep.subr.mxu0 0.0
          %1163 = vmatpush1.msra.mxu0 %v887
          %1164 = vmatprep.subr.mxu0 0.0
          %1165 = vmatpush2.msra.mxu0 0.0
          %1166 = vmatprep.subr.mxu0 0.0
          %1167 = vmatpush2.msra.mxu0 0.0
          %1168 = vmatprep.subr.mxu0 0.0
          %1169 = vmatpush2.msra.mxu0 0.0
          %1170 = vmatprep.subr.mxu0 0.0
          %1171 = vmatpush2.msra.mxu0 0.0
          %1172 = vmatprep.subr.mxu0 0.0
          %1173 = vmatpush2.msra.mxu0 0.0
          %1174 = vmatprep.subr.mxu0 0.0
          %1175 = vmatpush2.msra.mxu0 0.0
          %1176 = vmatprep.subr.mxu0 0.0
          %1177 = vmatpush2.msra.mxu0 0.0
          %1178 = vmatprep.subr.mxu0 0.0
          %1179 = vmatpush2.msra.mxu0 0.0
          %1180 = vmatprep.subr.mxu0 0.0
          %1181 = vmatpush2.msra.mxu0 0.0
          %1182 = vmatprep.subr.mxu0 0.0
          %1183 = vmatpush2.msra.mxu0 0.0
          %1184 = vmatprep.subr.mxu0 0.0
          %1185 = vmatpush2.msra.mxu0 0.0
          %1186 = vmatprep.subr.mxu0 0.0
          %1187 = vmatpush2.msra.mxu0 0.0
          %1188 = vmatprep.subr.mxu0 0.0
          %1189 = vmatpush2.msra.mxu0 0.0
          %1190 = vmatprep.subr.mxu0 0.0
          %1191 = vmatpush2.msra.mxu0 0.0
          %1192 = vmatprep.subr.mxu0 0.0
          %1193 = vmatpush2.msra.mxu0 0.0
          %1194 = vmatprep.subr.mxu0 0.0
          %1195 = vmatpush2.msra.mxu0 0.0
          %1196 = vmatprep.mubr.f32.mxu0 0.0
          %1197 = vmatmul.mubr.f32.gmra.mxu0 %v920
          %v1198 = vpop.f32.mrf.mxu0
          %v1199 = vadd.f32 %v914, %v1198
          %v1200 = vpop.f32.mrf.mxu0
          %1201 = vdwg.mxu0
          %1202 = vst.msk [vmem:[#allocation3] sm:$0xff] %vm869, %v989
          %1203 = vst.msk [vmem:[#allocation3 + $0x8] sm:$0xff] %vm869, %v1059
          %1204 = vst.msk [vmem:[#allocation3 + $0x10] sm:$0xff] %vm869, %v1129
          %1205 = vst.msk [vmem:[#allocation3 + $0x18] sm:$0xff] %vm869, %v1199
        $region72: #{tpu_custom_call.1} parent=67 // pred_fallthru
          _
        %v1206 = vld [vmem:[%s520] sm:$0xff]
        %v1207 = vld [vmem:[%s4] sm:$0xff]
        %v1208 = vld [vmem:[%s4 + $0x8] sm:$0xff]
        %v1209 = vld [vmem:[%s4 + $0x10] sm:$0xff]
        %v1210 = vld [vmem:[%s4 + $0x18] sm:$0xff]
        %v1211 = vld [vmem:[%s4 + $0x20] sm:$0xff]
        %v1212 = vld [vmem:[%s4 + $0x28] sm:$0xff]
        %v1213 = vld [vmem:[%s4 + $0x30] sm:$0xff]
        %v1214 = vld [vmem:[%s4 + $0x38] sm:$0xff]
        %v1215 = vld [vmem:[%s4 + $0x40] sm:$0xff]
        %v1216 = vld [vmem:[%s4 + $0x48] sm:$0xff]
        %v1217 = vld [vmem:[%s4 + $0x50] sm:$0xff]
        %v1218 = vld [vmem:[%s4 + $0x58] sm:$0xff]
        %v1219 = vld [vmem:[%s4 + $0x60] sm:$0xff]
        %v1220 = vld [vmem:[%s4 + $0x68] sm:$0xff]
        %v1221 = vld [vmem:[%s4 + $0x70] sm:$0xff]
        %v1222 = vld [vmem:[%s4 + $0x78] sm:$0xff]
        %v1223 = vld [vmem:[%s5] sm:$0x1]
        %v1224 = vld [vmem:[%s5 + $0x1] sm:$0x1]
        %v1225 = vld [vmem:[%s5 + $0x2] sm:$0x1]
        %v1226 = vld [vmem:[%s5 + $0x3] sm:$0x1]
        %v1231 = vlaneseq
        %v1232 = vshrl.u32 %v1231, 7
        %v1233 = vsub.s32 0, %v1232
        %v1234 = vrot.slane %v1223, %v1233
        %v1235 = vlaneseq
        %v1236 = vshrl.u32 %v1235, 7
        %v1237 = vsub.s32 0, %v1236
        %v1238 = vrot.slane %v1224, %v1237
        %v1239 = vlaneseq
        %v1240 = vshrl.u32 %v1239, 7
        %v1241 = vsub.s32 0, %v1240
        %v1242 = vrot.slane %v1225, %v1241
        %v1243 = vlaneseq
        %v1244 = vshrl.u32 %v1243, 7
        %v1245 = vsub.s32 0, %v1244
        %v1246 = vrot.slane %v1226, %v1245
        %vm1251 = vcmask 261120
        %v1253 = vsel %vm1251, %v1206, 0
        %1255 = vmatprep.subr.mxu0 0.0
        %1256 = vmatpush1.msra.mxu0 0.0
        %1257 = vmatprep.subr.mxu0 0.0
        %1258 = vmatpush1.msra.mxu0 0.0
        %1259 = vmatprep.subr.mxu0 0.0
        %1260 = vmatpush1.msra.mxu0 0.0
        %1261 = vmatprep.subr.mxu0 0.0
        %1262 = vmatpush1.msra.mxu0 0.0
        %1263 = vmatprep.subr.mxu0 0.0
        %1264 = vmatpush1.msra.mxu0 0.0
        %1265 = vmatprep.subr.mxu0 0.0
        %1266 = vmatpush1.msra.mxu0 0.0
        %1267 = vmatprep.subr.mxu0 0.0
        %1268 = vmatpush1.msra.mxu0 0.0
        %1269 = vmatprep.subr.mxu0 0.0
        %1270 = vmatpush1.msra.mxu0 0.0
        %1271 = vmatprep.subr.mxu0 0.0
        %1272 = vmatpush1.msra.mxu0 0.0
        %1273 = vmatprep.subr.mxu0 0.0
        %1274 = vmatpush1.msra.mxu0 0.0
        %1275 = vmatprep.subr.mxu0 0.0
        %1276 = vmatpush1.msra.mxu0 0.0
        %1277 = vmatprep.subr.mxu0 0.0
        %1278 = vmatpush1.msra.mxu0 0.0
        %1279 = vmatprep.subr.mxu0 0.0
        %1280 = vmatpush1.msra.mxu0 %v1210
        %1281 = vmatprep.subr.mxu0 0.0
        %1282 = vmatpush1.msra.mxu0 %v1209
        %1283 = vmatprep.subr.mxu0 0.0
        %1284 = vmatpush1.msra.mxu0 %v1208
        %1285 = vmatprep.subr.mxu0 0.0
        %1286 = vmatpush1.msra.mxu0 %v1207
        %1287 = vmatprep.subr.mxu0 0.0
        %1288 = vmatpush2.msra.mxu0 0.0
        %1289 = vmatprep.subr.mxu0 0.0
        %1290 = vmatpush2.msra.mxu0 0.0
        %1291 = vmatprep.subr.mxu0 0.0
        %1292 = vmatpush2.msra.mxu0 0.0
        %1293 = vmatprep.subr.mxu0 0.0
        %1294 = vmatpush2.msra.mxu0 0.0
        %1295 = vmatprep.subr.mxu0 0.0
        %1296 = vmatpush2.msra.mxu0 0.0
        %1297 = vmatprep.subr.mxu0 0.0
        %1298 = vmatpush2.msra.mxu0 0.0
        %1299 = vmatprep.subr.mxu0 0.0
        %1300 = vmatpush2.msra.mxu0 0.0
        %1301 = vmatprep.subr.mxu0 0.0
        %1302 = vmatpush2.msra.mxu0 0.0
        %1303 = vmatprep.subr.mxu0 0.0
        %1304 = vmatpush2.msra.mxu0 0.0
        %1305 = vmatprep.subr.mxu0 0.0
        %1306 = vmatpush2.msra.mxu0 0.0
        %1307 = vmatprep.subr.mxu0 0.0
        %1308 = vmatpush2.msra.mxu0 0.0
        %1309 = vmatprep.subr.mxu0 0.0
        %1310 = vmatpush2.msra.mxu0 0.0
        %1311 = vmatprep.subr.mxu0 0.0
        %1312 = vmatpush2.msra.mxu0 0.0
        %1313 = vmatprep.subr.mxu0 0.0
        %1314 = vmatpush2.msra.mxu0 0.0
        %1315 = vmatprep.subr.mxu0 0.0
        %1316 = vmatpush2.msra.mxu0 0.0
        %1317 = vmatprep.subr.mxu0 0.0
        %1318 = vmatpush2.msra.mxu0 0.0
        %1319 = vmatprep.mubr.f32.mxu0 0.0
        %1320 = vmatmul.mubr.f32.gmra.mxu0 %v1253
        %v1321 = vpop.f32.mrf.mxu0
        %v1322 = vadd.f32 %v1234, %v1321
        %v1323 = vpop.f32.mrf.mxu0
        %1324 = vdwg.mxu0
        %1325 = vmatprep.subr.mxu0 0.0
        %1326 = vmatpush1.msra.mxu0 0.0
        %1327 = vmatprep.subr.mxu0 0.0
        %1328 = vmatpush1.msra.mxu0 0.0
        %1329 = vmatprep.subr.mxu0 0.0
        %1330 = vmatpush1.msra.mxu0 0.0
        %1331 = vmatprep.subr.mxu0 0.0
        %1332 = vmatpush1.msra.mxu0 0.0
        %1333 = vmatprep.subr.mxu0 0.0
        %1334 = vmatpush1.msra.mxu0 0.0
        %1335 = vmatprep.subr.mxu0 0.0
        %1336 = vmatpush1.msra.mxu0 0.0
        %1337 = vmatprep.subr.mxu0 0.0
        %1338 = vmatpush1.msra.mxu0 0.0
        %1339 = vmatprep.subr.mxu0 0.0
        %1340 = vmatpush1.msra.mxu0 0.0
        %1341 = vmatprep.subr.mxu0 0.0
        %1342 = vmatpush1.msra.mxu0 0.0
        %1343 = vmatprep.subr.mxu0 0.0
        %1344 = vmatpush1.msra.mxu0 0.0
        %1345 = vmatprep.subr.mxu0 0.0
        %1346 = vmatpush1.msra.mxu0 0.0
        %1347 = vmatprep.subr.mxu0 0.0
        %1348 = vmatpush1.msra.mxu0 0.0
        %1349 = vmatprep.subr.mxu0 0.0
        %1350 = vmatpush1.msra.mxu0 %v1214
        %1351 = vmatprep.subr.mxu0 0.0
        %1352 = vmatpush1.msra.mxu0 %v1213
        %1353 = vmatprep.subr.mxu0 0.0
        %1354 = vmatpush1.msra.mxu0 %v1212
        %1355 = vmatprep.subr.mxu0 0.0
        %1356 = vmatpush1.msra.mxu0 %v1211
        %1357 = vmatprep.subr.mxu0 0.0
        %1358 = vmatpush2.msra.mxu0 0.0
        %1359 = vmatprep.subr.mxu0 0.0
        %1360 = vmatpush2.msra.mxu0 0.0
        %1361 = vmatprep.subr.mxu0 0.0
        %1362 = vmatpush2.msra.mxu0 0.0
        %1363 = vmatprep.subr.mxu0 0.0
        %1364 = vmatpush2.msra.mxu0 0.0
        %1365 = vmatprep.subr.mxu0 0.0
        %1366 = vmatpush2.msra.mxu0 0.0
        %1367 = vmatprep.subr.mxu0 0.0
        %1368 = vmatpush2.msra.mxu0 0.0
        %1369 = vmatprep.subr.mxu0 0.0
        %1370 = vmatpush2.msra.mxu0 0.0
        %1371 = vmatprep.subr.mxu0 0.0
        %1372 = vmatpush2.msra.mxu0 0.0
        %1373 = vmatprep.subr.mxu0 0.0
        %1374 = vmatpush2.msra.mxu0 0.0
        %1375 = vmatprep.subr.mxu0 0.0
        %1376 = vmatpush2.msra.mxu0 0.0
        %1377 = vmatprep.subr.mxu0 0.0
        %1378 = vmatpush2.msra.mxu0 0.0
        %1379 = vmatprep.subr.mxu0 0.0
        %1380 = vmatpush2.msra.mxu0 0.0
        %1381 = vmatprep.subr.mxu0 0.0
        %1382 = vmatpush2.msra.mxu0 0.0
        %1383 = vmatprep.subr.mxu0 0.0
        %1384 = vmatpush2.msra.mxu0 0.0
        %1385 = vmatprep.subr.mxu0 0.0
        %1386 = vmatpush2.msra.mxu0 0.0
        %1387 = vmatprep.subr.mxu0 0.0
        %1388 = vmatpush2.msra.mxu0 0.0
        %1389 = vmatprep.mubr.f32.mxu0 0.0
        %1390 = vmatmul.mubr.f32.gmra.mxu0 %v1253
        %v1391 = vpop.f32.mrf.mxu0
        %v1392 = vadd.f32 %v1238, %v1391
        %v1393 = vpop.f32.mrf.mxu0
        %1394 = vdwg.mxu0
        %1395 = vmatprep.subr.mxu0 0.0
        %1396 = vmatpush1.msra.mxu0 0.0
        %1397 = vmatprep.subr.mxu0 0.0
        %1398 = vmatpush1.msra.mxu0 0.0
        %1399 = vmatprep.subr.mxu0 0.0
        %1400 = vmatpush1.msra.mxu0 0.0
        %1401 = vmatprep.subr.mxu0 0.0
        %1402 = vmatpush1.msra.mxu0 0.0
        %1403 = vmatprep.subr.mxu0 0.0
        %1404 = vmatpush1.msra.mxu0 0.0
        %1405 = vmatprep.subr.mxu0 0.0
        %1406 = vmatpush1.msra.mxu0 0.0
        %1407 = vmatprep.subr.mxu0 0.0
        %1408 = vmatpush1.msra.mxu0 0.0
        %1409 = vmatprep.subr.mxu0 0.0
        %1410 = vmatpush1.msra.mxu0 0.0
        %1411 = vmatprep.subr.mxu0 0.0
        %1412 = vmatpush1.msra.mxu0 0.0
        %1413 = vmatprep.subr.mxu0 0.0
        %1414 = vmatpush1.msra.mxu0 0.0
        %1415 = vmatprep.subr.mxu0 0.0
        %1416 = vmatpush1.msra.mxu0 0.0
        %1417 = vmatprep.subr.mxu0 0.0
        %1418 = vmatpush1.msra.mxu0 0.0
        %1419 = vmatprep.subr.mxu0 0.0
        %1420 = vmatpush1.msra.mxu0 %v1218
        %1421 = vmatprep.subr.mxu0 0.0
        %1422 = vmatpush1.msra.mxu0 %v1217
        %1423 = vmatprep.subr.mxu0 0.0
        %1424 = vmatpush1.msra.mxu0 %v1216
        %1425 = vmatprep.subr.mxu0 0.0
        %1426 = vmatpush1.msra.mxu0 %v1215
        %1427 = vmatprep.subr.mxu0 0.0
        %1428 = vmatpush2.msra.mxu0 0.0
        %1429 = vmatprep.subr.mxu0 0.0
        %1430 = vmatpush2.msra.mxu0 0.0
        %1431 = vmatprep.subr.mxu0 0.0
        %1432 = vmatpush2.msra.mxu0 0.0
        %1433 = vmatprep.subr.mxu0 0.0
        %1434 = vmatpush2.msra.mxu0 0.0
        %1435 = vmatprep.subr.mxu0 0.0
        %1436 = vmatpush2.msra.mxu0 0.0
        %1437 = vmatprep.subr.mxu0 0.0
        %1438 = vmatpush2.msra.mxu0 0.0
        %1439 = vmatprep.subr.mxu0 0.0
        %1440 = vmatpush2.msra.mxu0 0.0
        %1441 = vmatprep.subr.mxu0 0.0
        %1442 = vmatpush2.msra.mxu0 0.0
        %1443 = vmatprep.subr.mxu0 0.0
        %1444 = vmatpush2.msra.mxu0 0.0
        %1445 = vmatprep.subr.mxu0 0.0
        %1446 = vmatpush2.msra.mxu0 0.0
        %1447 = vmatprep.subr.mxu0 0.0
        %1448 = vmatpush2.msra.mxu0 0.0
        %1449 = vmatprep.subr.mxu0 0.0
        %1450 = vmatpush2.msra.mxu0 0.0
        %1451 = vmatprep.subr.mxu0 0.0
        %1452 = vmatpush2.msra.mxu0 0.0
        %1453 = vmatprep.subr.mxu0 0.0
        %1454 = vmatpush2.msra.mxu0 0.0
        %1455 = vmatprep.subr.mxu0 0.0
        %1456 = vmatpush2.msra.mxu0 0.0
        %1457 = vmatprep.subr.mxu0 0.0
        %1458 = vmatpush2.msra.mxu0 0.0
        %1459 = vmatprep.mubr.f32.mxu0 0.0
        %1460 = vmatmul.mubr.f32.gmra.mxu0 %v1253
        %v1461 = vpop.f32.mrf.mxu0
        %v1462 = vadd.f32 %v1242, %v1461
        %v1463 = vpop.f32.mrf.mxu0
        %1464 = vdwg.mxu0
        %1465 = vmatprep.subr.mxu0 0.0
        %1466 = vmatpush1.msra.mxu0 0.0
        %1467 = vmatprep.subr.mxu0 0.0
        %1468 = vmatpush1.msra.mxu0 0.0
        %1469 = vmatprep.subr.mxu0 0.0
        %1470 = vmatpush1.msra.mxu0 0.0
        %1471 = vmatprep.subr.mxu0 0.0
        %1472 = vmatpush1.msra.mxu0 0.0
        %1473 = vmatprep.subr.mxu0 0.0
        %1474 = vmatpush1.msra.mxu0 0.0
        %1475 = vmatprep.subr.mxu0 0.0
        %1476 = vmatpush1.msra.mxu0 0.0
        %1477 = vmatprep.subr.mxu0 0.0
        %1478 = vmatpush1.msra.mxu0 0.0
        %1479 = vmatprep.subr.mxu0 0.0
        %1480 = vmatpush1.msra.mxu0 0.0
        %1481 = vmatprep.subr.mxu0 0.0
        %1482 = vmatpush1.msra.mxu0 0.0
        %1483 = vmatprep.subr.mxu0 0.0
        %1484 = vmatpush1.msra.mxu0 0.0
        %1485 = vmatprep.subr.mxu0 0.0
        %1486 = vmatpush1.msra.mxu0 0.0
        %1487 = vmatprep.subr.mxu0 0.0
        %1488 = vmatpush1.msra.mxu0 0.0
        %1489 = vmatprep.subr.mxu0 0.0
        %1490 = vmatpush1.msra.mxu0 %v1222
        %1491 = vmatprep.subr.mxu0 0.0
        %1492 = vmatpush1.msra.mxu0 %v1221
        %1493 = vmatprep.subr.mxu0 0.0
        %1494 = vmatpush1.msra.mxu0 %v1220
        %1495 = vmatprep.subr.mxu0 0.0
        %1496 = vmatpush1.msra.mxu0 %v1219
        %1497 = vmatprep.subr.mxu0 0.0
        %1498 = vmatpush2.msra.mxu0 0.0
        %1499 = vmatprep.subr.mxu0 0.0
        %1500 = vmatpush2.msra.mxu0 0.0
        %1501 = vmatprep.subr.mxu0 0.0
        %1502 = vmatpush2.msra.mxu0 0.0
        %1503 = vmatprep.subr.mxu0 0.0
        %1504 = vmatpush2.msra.mxu0 0.0
        %1505 = vmatprep.subr.mxu0 0.0
        %1506 = vmatpush2.msra.mxu0 0.0
        %1507 = vmatprep.subr.mxu0 0.0
        %1508 = vmatpush2.msra.mxu0 0.0
        %1509 = vmatprep.subr.mxu0 0.0
        %1510 = vmatpush2.msra.mxu0 0.0
        %1511 = vmatprep.subr.mxu0 0.0
        %1512 = vmatpush2.msra.mxu0 0.0
        %1513 = vmatprep.subr.mxu0 0.0
        %1514 = vmatpush2.msra.mxu0 0.0
        %1515 = vmatprep.subr.mxu0 0.0
        %1516 = vmatpush2.msra.mxu0 0.0
        %1517 = vmatprep.subr.mxu0 0.0
        %1518 = vmatpush2.msra.mxu0 0.0
        %1519 = vmatprep.subr.mxu0 0.0
        %1520 = vmatpush2.msra.mxu0 0.0
        %1521 = vmatprep.subr.mxu0 0.0
        %1522 = vmatpush2.msra.mxu0 0.0
        %1523 = vmatprep.subr.mxu0 0.0
        %1524 = vmatpush2.msra.mxu0 0.0
        %1525 = vmatprep.subr.mxu0 0.0
        %1526 = vmatpush2.msra.mxu0 0.0
        %1527 = vmatprep.subr.mxu0 0.0
        %1528 = vmatpush2.msra.mxu0 0.0
        %1529 = vmatprep.mubr.f32.mxu0 0.0
        %1530 = vmatmul.mubr.f32.gmra.mxu0 %v1253
        %v1531 = vpop.f32.mrf.mxu0
        %v1532 = vadd.f32 %v1246, %v1531
        %v1533 = vpop.f32.mrf.mxu0
        %1534 = vdwg.mxu0
        %v1535 = vmul.f32 %v1322, 0.35355338
        %v1536 = vmul.f32 %v1392, 0.35355338
        %v1537 = vmul.f32 %v1462, 0.35355338
        %v1538 = vmul.f32 %v1532, 0.35355338
        %v1539 = vld [vmem:[#allocation2] sm:$0xff]
        %v1540 = vld [vmem:[#allocation2 + $0x8] sm:$0xff]
        %v1541 = vld [vmem:[#allocation2 + $0x10] sm:$0xff]
        %v1542 = vld [vmem:[#allocation2 + $0x18] sm:$0xff]
        %v1543 = vld [vmem:[#allocation3] sm:$0xff]
        %v1544 = vld [vmem:[#allocation3 + $0x8] sm:$0xff]
        %v1545 = vld [vmem:[#allocation3 + $0x10] sm:$0xff]
        %v1546 = vld [vmem:[#allocation3 + $0x18] sm:$0xff]
        %vm1547 = vcmask 64512
        %v1549 = vsel %vm1547, %v1535, 0
        %v1552 = vsel %vm1547, %v1539, 0
        %1554 = vmatprep.subr.mxu0 0.0
        %1555 = vmatpush1.xpose.msra.mxu0 0.0
        %1556 = vmatprep.subr.mxu0 0.0
        %1557 = vmatpush1.xpose.msra.mxu0 0.0
        %1558 = vmatprep.subr.mxu0 0.0
        %1559 = vmatpush1.xpose.msra.mxu0 0.0
        %1560 = vmatprep.subr.mxu0 0.0
        %1561 = vmatpush1.xpose.msra.mxu0 0.0
        %1562 = vmatprep.subr.mxu0 0.0
        %1563 = vmatpush1.xpose.msra.mxu0 0.0
        %1564 = vmatprep.subr.mxu0 0.0
        %1565 = vmatpush1.xpose.msra.mxu0 0.0
        %1566 = vmatprep.subr.mxu0 0.0
        %1567 = vmatpush1.xpose.msra.mxu0 0.0
        %1568 = vmatprep.subr.mxu0 0.0
        %1569 = vmatpush1.xpose.msra.mxu0 0.0
        %1570 = vmatprep.subr.mxu0 0.0
        %1571 = vmatpush1.xpose.msra.mxu0 0.0
        %1572 = vmatprep.subr.mxu0 0.0
        %1573 = vmatpush1.xpose.msra.mxu0 0.0
        %1574 = vmatprep.subr.mxu0 0.0
        %1575 = vmatpush1.xpose.msra.mxu0 0.0
        %1576 = vmatprep.subr.mxu0 0.0
        %1577 = vmatpush1.xpose.msra.mxu0 0.0
        %1578 = vmatprep.subr.mxu0 0.0
        %1579 = vmatpush1.xpose.msra.mxu0 0.0
        %1580 = vmatprep.subr.mxu0 0.0
        %1581 = vmatpush1.xpose.msra.mxu0 0.0
        %1582 = vmatprep.subr.mxu0 0.0
        %1583 = vmatpush1.xpose.msra.mxu0 0.0
        %1584 = vmatprep.subr.mxu0 0.0
        %1585 = vmatpush1.xpose.msra.mxu0 %v1552
        %1586 = vmatprep.subr.mxu0 0.0
        %1587 = vmatpush2.xpose.msra.mxu0 0.0
        %1588 = vmatprep.subr.mxu0 0.0
        %1589 = vmatpush2.xpose.msra.mxu0 0.0
        %1590 = vmatprep.subr.mxu0 0.0
        %1591 = vmatpush2.xpose.msra.mxu0 0.0
        %1592 = vmatprep.subr.mxu0 0.0
        %1593 = vmatpush2.xpose.msra.mxu0 0.0
        %1594 = vmatprep.subr.mxu0 0.0
        %1595 = vmatpush2.xpose.msra.mxu0 0.0
        %1596 = vmatprep.subr.mxu0 0.0
        %1597 = vmatpush2.xpose.msra.mxu0 0.0
        %1598 = vmatprep.subr.mxu0 0.0
        %1599 = vmatpush2.xpose.msra.mxu0 0.0
        %1600 = vmatprep.subr.mxu0 0.0
        %1601 = vmatpush2.xpose.msra.mxu0 0.0
        %1602 = vmatprep.subr.mxu0 0.0
        %1603 = vmatpush2.xpose.msra.mxu0 0.0
        %1604 = vmatprep.subr.mxu0 0.0
        %1605 = vmatpush2.xpose.msra.mxu0 0.0
        %1606 = vmatprep.subr.mxu0 0.0
        %1607 = vmatpush2.xpose.msra.mxu0 0.0
        %1608 = vmatprep.subr.mxu0 0.0
        %1609 = vmatpush2.xpose.msra.mxu0 0.0
        %1610 = vmatprep.subr.mxu0 0.0
        %1611 = vmatpush2.xpose.msra.mxu0 0.0
        %1612 = vmatprep.subr.mxu0 0.0
        %1613 = vmatpush2.xpose.msra.mxu0 0.0
        %1614 = vmatprep.subr.mxu0 0.0
        %1615 = vmatpush2.xpose.msra.mxu0 0.0
        %1616 = vmatprep.subr.mxu0 0.0
        %1617 = vmatpush2.xpose.msra.mxu0 0.0
        %1618 = vmatprep.mubr.f32.mxu0 0.0
        %1619 = vmatmul.mubr.f32.gmra.mxu0 %v1549
        %v1620 = vpop.f32.mrf.mxu0
        %v1621 = vadd.f32 0.0, %v1620
        %v1622 = vpop.f32.mrf.mxu0
        %1623 = vdwg.mxu0
        %v1625 = vsel %vm1547, %v1536, 0
        %v1628 = vsel %vm1547, %v1540, 0
        %1630 = vmatprep.subr.mxu0 0.0
        %1631 = vmatpush1.xpose.msra.mxu0 0.0
        %1632 = vmatprep.subr.mxu0 0.0
        %1633 = vmatpush1.xpose.msra.mxu0 0.0
        %1634 = vmatprep.subr.mxu0 0.0
        %1635 = vmatpush1.xpose.msra.mxu0 0.0
        %1636 = vmatprep.subr.mxu0 0.0
        %1637 = vmatpush1.xpose.msra.mxu0 0.0
        %1638 = vmatprep.subr.mxu0 0.0
        %1639 = vmatpush1.xpose.msra.mxu0 0.0
        %1640 = vmatprep.subr.mxu0 0.0
        %1641 = vmatpush1.xpose.msra.mxu0 0.0
        %1642 = vmatprep.subr.mxu0 0.0
        %1643 = vmatpush1.xpose.msra.mxu0 0.0
        %1644 = vmatprep.subr.mxu0 0.0
        %1645 = vmatpush1.xpose.msra.mxu0 0.0
        %1646 = vmatprep.subr.mxu0 0.0
        %1647 = vmatpush1.xpose.msra.mxu0 0.0
        %1648 = vmatprep.subr.mxu0 0.0
        %1649 = vmatpush1.xpose.msra.mxu0 0.0
        %1650 = vmatprep.subr.mxu0 0.0
        %1651 = vmatpush1.xpose.msra.mxu0 0.0
        %1652 = vmatprep.subr.mxu0 0.0
        %1653 = vmatpush1.xpose.msra.mxu0 0.0
        %1654 = vmatprep.subr.mxu0 0.0
        %1655 = vmatpush1.xpose.msra.mxu0 0.0
        %1656 = vmatprep.subr.mxu0 0.0
        %1657 = vmatpush1.xpose.msra.mxu0 0.0
        %1658 = vmatprep.subr.mxu0 0.0
        %1659 = vmatpush1.xpose.msra.mxu0 0.0
        %1660 = vmatprep.subr.mxu0 0.0
        %1661 = vmatpush1.xpose.msra.mxu0 %v1628
        %1662 = vmatprep.subr.mxu0 0.0
        %1663 = vmatpush2.xpose.msra.mxu0 0.0
        %1664 = vmatprep.subr.mxu0 0.0
        %1665 = vmatpush2.xpose.msra.mxu0 0.0
        %1666 = vmatprep.subr.mxu0 0.0
        %1667 = vmatpush2.xpose.msra.mxu0 0.0
        %1668 = vmatprep.subr.mxu0 0.0
        %1669 = vmatpush2.xpose.msra.mxu0 0.0
        %1670 = vmatprep.subr.mxu0 0.0
        %1671 = vmatpush2.xpose.msra.mxu0 0.0
        %1672 = vmatprep.subr.mxu0 0.0
        %1673 = vmatpush2.xpose.msra.mxu0 0.0
        %1674 = vmatprep.subr.mxu0 0.0
        %1675 = vmatpush2.xpose.msra.mxu0 0.0
        %1676 = vmatprep.subr.mxu0 0.0
        %1677 = vmatpush2.xpose.msra.mxu0 0.0
        %1678 = vmatprep.subr.mxu0 0.0
        %1679 = vmatpush2.xpose.msra.mxu0 0.0
        %1680 = vmatprep.subr.mxu0 0.0
        %1681 = vmatpush2.xpose.msra.mxu0 0.0
        %1682 = vmatprep.subr.mxu0 0.0
        %1683 = vmatpush2.xpose.msra.mxu0 0.0
        %1684 = vmatprep.subr.mxu0 0.0
        %1685 = vmatpush2.xpose.msra.mxu0 0.0
        %1686 = vmatprep.subr.mxu0 0.0
        %1687 = vmatpush2.xpose.msra.mxu0 0.0
        %1688 = vmatprep.subr.mxu0 0.0
        %1689 = vmatpush2.xpose.msra.mxu0 0.0
        %1690 = vmatprep.subr.mxu0 0.0
        %1691 = vmatpush2.xpose.msra.mxu0 0.0
        %1692 = vmatprep.subr.mxu0 0.0
        %1693 = vmatpush2.xpose.msra.mxu0 0.0
        %1694 = vmatprep.mubr.f32.mxu0 0.0
        %1695 = vmatmul.mubr.f32.gmra.mxu0 %v1625
        %v1696 = vpop.f32.mrf.mxu0
        %v1697 = vadd.f32 0.0, %v1696
        %v1698 = vpop.f32.mrf.mxu0
        %1699 = vdwg.mxu0
        %v1701 = vsel %vm1547, %v1537, 0
        %v1704 = vsel %vm1547, %v1541, 0
        %1706 = vmatprep.subr.mxu0 0.0
        %1707 = vmatpush1.xpose.msra.mxu0 0.0
        %1708 = vmatprep.subr.mxu0 0.0
        %1709 = vmatpush1.xpose.msra.mxu0 0.0
        %1710 = vmatprep.subr.mxu0 0.0
        %1711 = vmatpush1.xpose.msra.mxu0 0.0
        %1712 = vmatprep.subr.mxu0 0.0
        %1713 = vmatpush1.xpose.msra.mxu0 0.0
        %1714 = vmatprep.subr.mxu0 0.0
        %1715 = vmatpush1.xpose.msra.mxu0 0.0
        %1716 = vmatprep.subr.mxu0 0.0
        %1717 = vmatpush1.xpose.msra.mxu0 0.0
        %1718 = vmatprep.subr.mxu0 0.0
        %1719 = vmatpush1.xpose.msra.mxu0 0.0
        %1720 = vmatprep.subr.mxu0 0.0
        %1721 = vmatpush1.xpose.msra.mxu0 0.0
        %1722 = vmatprep.subr.mxu0 0.0
        %1723 = vmatpush1.xpose.msra.mxu0 0.0
        %1724 = vmatprep.subr.mxu0 0.0
        %1725 = vmatpush1.xpose.msra.mxu0 0.0
        %1726 = vmatprep.subr.mxu0 0.0
        %1727 = vmatpush1.xpose.msra.mxu0 0.0
        %1728 = vmatprep.subr.mxu0 0.0
        %1729 = vmatpush1.xpose.msra.mxu0 0.0
        %1730 = vmatprep.subr.mxu0 0.0
        %1731 = vmatpush1.xpose.msra.mxu0 0.0
        %1732 = vmatprep.subr.mxu0 0.0
        %1733 = vmatpush1.xpose.msra.mxu0 0.0
        %1734 = vmatprep.subr.mxu0 0.0
        %1735 = vmatpush1.xpose.msra.mxu0 0.0
        %1736 = vmatprep.subr.mxu0 0.0
        %1737 = vmatpush1.xpose.msra.mxu0 %v1704
        %1738 = vmatprep.subr.mxu0 0.0
        %1739 = vmatpush2.xpose.msra.mxu0 0.0
        %1740 = vmatprep.subr.mxu0 0.0
        %1741 = vmatpush2.xpose.msra.mxu0 0.0
        %1742 = vmatprep.subr.mxu0 0.0
        %1743 = vmatpush2.xpose.msra.mxu0 0.0
        %1744 = vmatprep.subr.mxu0 0.0
        %1745 = vmatpush2.xpose.msra.mxu0 0.0
        %1746 = vmatprep.subr.mxu0 0.0
        %1747 = vmatpush2.xpose.msra.mxu0 0.0
        %1748 = vmatprep.subr.mxu0 0.0
        %1749 = vmatpush2.xpose.msra.mxu0 0.0
        %1750 = vmatprep.subr.mxu0 0.0
        %1751 = vmatpush2.xpose.msra.mxu0 0.0
        %1752 = vmatprep.subr.mxu0 0.0
        %1753 = vmatpush2.xpose.msra.mxu0 0.0
        %1754 = vmatprep.subr.mxu0 0.0
        %1755 = vmatpush2.xpose.msra.mxu0 0.0
        %1756 = vmatprep.subr.mxu0 0.0
        %1757 = vmatpush2.xpose.msra.mxu0 0.0
        %1758 = vmatprep.subr.mxu0 0.0
        %1759 = vmatpush2.xpose.msra.mxu0 0.0
        %1760 = vmatprep.subr.mxu0 0.0
        %1761 = vmatpush2.xpose.msra.mxu0 0.0
        %1762 = vmatprep.subr.mxu0 0.0
        %1763 = vmatpush2.xpose.msra.mxu0 0.0
        %1764 = vmatprep.subr.mxu0 0.0
        %1765 = vmatpush2.xpose.msra.mxu0 0.0
        %1766 = vmatprep.subr.mxu0 0.0
        %1767 = vmatpush2.xpose.msra.mxu0 0.0
        %1768 = vmatprep.subr.mxu0 0.0
        %1769 = vmatpush2.xpose.msra.mxu0 0.0
        %1770 = vmatprep.mubr.f32.mxu0 0.0
        %1771 = vmatmul.mubr.f32.gmra.mxu0 %v1701
        %v1772 = vpop.f32.mrf.mxu0
        %v1773 = vadd.f32 0.0, %v1772
        %v1774 = vpop.f32.mrf.mxu0
        %1775 = vdwg.mxu0
        %v1777 = vsel %vm1547, %v1538, 0
        %v1780 = vsel %vm1547, %v1542, 0
        %1782 = vmatprep.subr.mxu0 0.0
        %1783 = vmatpush1.xpose.msra.mxu0 0.0
        %1784 = vmatprep.subr.mxu0 0.0
        %1785 = vmatpush1.xpose.msra.mxu0 0.0
        %1786 = vmatprep.subr.mxu0 0.0
        %1787 = vmatpush1.xpose.msra.mxu0 0.0
        %1788 = vmatprep.subr.mxu0 0.0
        %1789 = vmatpush1.xpose.msra.mxu0 0.0
        %1790 = vmatprep.subr.mxu0 0.0
        %1791 = vmatpush1.xpose.msra.mxu0 0.0
        %1792 = vmatprep.subr.mxu0 0.0
        %1793 = vmatpush1.xpose.msra.mxu0 0.0
        %1794 = vmatprep.subr.mxu0 0.0
        %1795 = vmatpush1.xpose.msra.mxu0 0.0
        %1796 = vmatprep.subr.mxu0 0.0
        %1797 = vmatpush1.xpose.msra.mxu0 0.0
        %1798 = vmatprep.subr.mxu0 0.0
        %1799 = vmatpush1.xpose.msra.mxu0 0.0
        %1800 = vmatprep.subr.mxu0 0.0
        %1801 = vmatpush1.xpose.msra.mxu0 0.0
        %1802 = vmatprep.subr.mxu0 0.0
        %1803 = vmatpush1.xpose.msra.mxu0 0.0
        %1804 = vmatprep.subr.mxu0 0.0
        %1805 = vmatpush1.xpose.msra.mxu0 0.0
        %1806 = vmatprep.subr.mxu0 0.0
        %1807 = vmatpush1.xpose.msra.mxu0 0.0
        %1808 = vmatprep.subr.mxu0 0.0
        %1809 = vmatpush1.xpose.msra.mxu0 0.0
        %1810 = vmatprep.subr.mxu0 0.0
        %1811 = vmatpush1.xpose.msra.mxu0 0.0
        %1812 = vmatprep.subr.mxu0 0.0
        %1813 = vmatpush1.xpose.msra.mxu0 %v1780
        %1814 = vmatprep.subr.mxu0 0.0
        %1815 = vmatpush2.xpose.msra.mxu0 0.0
        %1816 = vmatprep.subr.mxu0 0.0
        %1817 = vmatpush2.xpose.msra.mxu0 0.0
        %1818 = vmatprep.subr.mxu0 0.0
        %1819 = vmatpush2.xpose.msra.mxu0 0.0
        %1820 = vmatprep.subr.mxu0 0.0
        %1821 = vmatpush2.xpose.msra.mxu0 0.0
        %1822 = vmatprep.subr.mxu0 0.0
        %1823 = vmatpush2.xpose.msra.mxu0 0.0
        %1824 = vmatprep.subr.mxu0 0.0
        %1825 = vmatpush2.xpose.msra.mxu0 0.0
        %1826 = vmatprep.subr.mxu0 0.0
        %1827 = vmatpush2.xpose.msra.mxu0 0.0
        %1828 = vmatprep.subr.mxu0 0.0
        %1829 = vmatpush2.xpose.msra.mxu0 0.0
        %1830 = vmatprep.subr.mxu0 0.0
        %1831 = vmatpush2.xpose.msra.mxu0 0.0
        %1832 = vmatprep.subr.mxu0 0.0
        %1833 = vmatpush2.xpose.msra.mxu0 0.0
        %1834 = vmatprep.subr.mxu0 0.0
        %1835 = vmatpush2.xpose.msra.mxu0 0.0
        %1836 = vmatprep.subr.mxu0 0.0
        %1837 = vmatpush2.xpose.msra.mxu0 0.0
        %1838 = vmatprep.subr.mxu0 0.0
        %1839 = vmatpush2.xpose.msra.mxu0 0.0
        %1840 = vmatprep.subr.mxu0 0.0
        %1841 = vmatpush2.xpose.msra.mxu0 0.0
        %1842 = vmatprep.subr.mxu0 0.0
        %1843 = vmatpush2.xpose.msra.mxu0 0.0
        %1844 = vmatprep.subr.mxu0 0.0
        %1845 = vmatpush2.xpose.msra.mxu0 0.0
        %1846 = vmatprep.mubr.f32.mxu0 0.0
        %1847 = vmatmul.mubr.f32.gmra.mxu0 %v1777
        %v1848 = vpop.f32.mrf.mxu0
        %v1849 = vadd.f32 0.0, %v1848
        %v1850 = vpop.f32.mrf.mxu0
        %1851 = vdwg.mxu0
        %v1852 = vld [vmem:[%s535] sm:$0x3]
        %v1853 = vunpack.c.0.s8 %v1852
        %vm1854 = vcmp.eq.s32.totalorder %v1853, 0
        %v1855 = vsel %vm1854, 1, 0
        %vm1856 = vcmp.eq.s32.totalorder %v1855, 1
        %v1857 = vsel %vm1856, -1e+09, %v1621
        %v1858 = vsel %vm1856, -1e+09, %v1697
        %v1859 = vsel %vm1856, -1e+09, %v1773
        %v1860 = vsel %vm1856, -1e+09, %v1849
        %1861 = vst.msk [vmem:[%s513] sm:$0xff] %vm1547, %v1857
        %1862 = vst.msk [vmem:[%s513 + $0x8] sm:$0xff] %vm1547, %v1858
        %1863 = vst.msk [vmem:[%s513 + $0x10] sm:$0xff] %vm1547, %v1859
        %1864 = vst.msk [vmem:[%s513 + $0x18] sm:$0xff] %vm1547, %v1860
        %v1865 = vsel %vm1547, %v1857, -inf
        %1866 = vmax.xlane.f32.xlu0 %v1865
        %v1867 = vpop.xlane.xlu0 %1866
        %v1868 = vsel %vm1547, %v1858, -inf
        %1869 = vmax.xlane.f32.xlu0 %v1868
        %v1870 = vpop.xlane.xlu0 %1869
        %v1871 = vsel %vm1547, %v1859, -inf
        %1872 = vmax.xlane.f32.xlu0 %v1871
        %v1873 = vpop.xlane.xlu0 %1872
        %v1874 = vsel %vm1547, %v1860, -inf
        %1875 = vmax.xlane.f32.xlu0 %v1874
        %v1876 = vpop.xlane.xlu0 %1875
        %v1877 = vsub.f32 %v1857, %v1867
        %v1878 = vsub.f32 %v1858, %v1870
        %v1879 = vsub.f32 %v1859, %v1873
        %v1880 = vsub.f32 %v1860, %v1876
        %v1881 = vmul.f32 %v1877, 1.442695
        %v1882 = vpow.pop %v1881
        %v1883 = vmul.f32 %v1878, 1.442695
        %v1884 = vpow.pop %v1883
        %v1885 = vmul.f32 %v1879, 1.442695
        %v1886 = vpow.pop %v1885
        %v1887 = vmul.f32 %v1880, 1.442695
        %v1888 = vpow.pop %v1887
        %v1889 = vsel %vm1547, %v1882, 0.0
        %1890 = vadd.xlane.f32.xlu0 %v1889
        %v1891 = vpop.xlane.xlu0 %1890
        %v1892 = vsel %vm1547, %v1884, 0.0
        %1893 = vadd.xlane.f32.xlu0 %v1892
        %v1894 = vpop.xlane.xlu0 %1893
        %v1895 = vsel %vm1547, %v1886, 0.0
        %1896 = vadd.xlane.f32.xlu0 %v1895
        %v1897 = vpop.xlane.xlu0 %1896
        %v1898 = vsel %vm1547, %v1888, 0.0
        %1899 = vadd.xlane.f32.xlu0 %v1898
        %v1900 = vpop.xlane.xlu0 %1899
        %v1901 = vrcp.pop %v1891
        %v1902 = vrcp.pop %v1894
        %v1903 = vrcp.pop %v1897
        %v1904 = vrcp.pop %v1900
        %v1905 = vmul.f32 %v1882, %v1901
        %v1906 = vmul.f32 %v1884, %v1902
        %v1907 = vmul.f32 %v1886, %v1903
        %v1908 = vmul.f32 %v1888, %v1904
        %v1910 = vsel %vm1547, %v1905, 0
        %1912 = vmatprep.subr.mxu0 0.0
        %1913 = vmatpush1.msra.mxu0 0.0
        %1914 = vmatprep.subr.mxu0 0.0
        %1915 = vmatpush1.msra.mxu0 0.0
        %1916 = vmatprep.subr.mxu0 0.0
        %1917 = vmatpush1.msra.mxu0 0.0
        %1918 = vmatprep.subr.mxu0 0.0
        %1919 = vmatpush1.msra.mxu0 0.0
        %1920 = vmatprep.subr.mxu0 0.0
        %1921 = vmatpush1.msra.mxu0 0.0
        %1922 = vmatprep.subr.mxu0 0.0
        %1923 = vmatpush1.msra.mxu0 0.0
        %1924 = vmatprep.subr.mxu0 0.0
        %1925 = vmatpush1.msra.mxu0 0.0
        %1926 = vmatprep.subr.mxu0 0.0
        %1927 = vmatpush1.msra.mxu0 0.0
        %1928 = vmatprep.subr.mxu0 0.0
        %1929 = vmatpush1.msra.mxu0 0.0
        %1930 = vmatprep.subr.mxu0 0.0
        %1931 = vmatpush1.msra.mxu0 0.0
        %1932 = vmatprep.subr.mxu0 0.0
        %1933 = vmatpush1.msra.mxu0 0.0
        %1934 = vmatprep.subr.mxu0 0.0
        %1935 = vmatpush1.msra.mxu0 0.0
        %1936 = vmatprep.subr.mxu0 0.0
        %1937 = vmatpush1.msra.mxu0 0.0
        %1938 = vmatprep.subr.mxu0 0.0
        %1939 = vmatpush1.msra.mxu0 0.0
        %1940 = vmatprep.subr.mxu0 0.0
        %1941 = vmatpush1.msra.mxu0 0.0
        %1942 = vmatprep.subr.mxu0 0.0
        %1943 = vmatpush1.msra.mxu0 %v1543
        %1944 = vmatprep.subr.mxu0 0.0
        %1945 = vmatpush2.msra.mxu0 0.0
        %1946 = vmatprep.subr.mxu0 0.0
        %1947 = vmatpush2.msra.mxu0 0.0
        %1948 = vmatprep.subr.mxu0 0.0
        %1949 = vmatpush2.msra.mxu0 0.0
        %1950 = vmatprep.subr.mxu0 0.0
        %1951 = vmatpush2.msra.mxu0 0.0
        %1952 = vmatprep.subr.mxu0 0.0
        %1953 = vmatpush2.msra.mxu0 0.0
        %1954 = vmatprep.subr.mxu0 0.0
        %1955 = vmatpush2.msra.mxu0 0.0
        %1956 = vmatprep.subr.mxu0 0.0
        %1957 = vmatpush2.msra.mxu0 0.0
        %1958 = vmatprep.subr.mxu0 0.0
        %1959 = vmatpush2.msra.mxu0 0.0
        %1960 = vmatprep.subr.mxu0 0.0
        %1961 = vmatpush2.msra.mxu0 0.0
        %1962 = vmatprep.subr.mxu0 0.0
        %1963 = vmatpush2.msra.mxu0 0.0
        %1964 = vmatprep.subr.mxu0 0.0
        %1965 = vmatpush2.msra.mxu0 0.0
        %1966 = vmatprep.subr.mxu0 0.0
        %1967 = vmatpush2.msra.mxu0 0.0
        %1968 = vmatprep.subr.mxu0 0.0
        %1969 = vmatpush2.msra.mxu0 0.0
        %1970 = vmatprep.subr.mxu0 0.0
        %1971 = vmatpush2.msra.mxu0 0.0
        %1972 = vmatprep.subr.mxu0 0.0
        %1973 = vmatpush2.msra.mxu0 0.0
        %1974 = vmatprep.subr.mxu0 0.0
        %1975 = vmatpush2.msra.mxu0 0.0
        %1976 = vmatprep.mubr.f32.mxu0 0.0
        %1977 = vmatmul.mubr.f32.gmra.mxu0 %v1910
        %v1978 = vpop.f32.mrf.mxu0
        %v1979 = vadd.f32 0.0, %v1978
        %v1980 = vpop.f32.mrf.mxu0
        %1981 = vdwg.mxu0
        %v1983 = vsel %vm1547, %v1906, 0
        %1985 = vmatprep.subr.mxu0 0.0
        %1986 = vmatpush1.msra.mxu0 0.0
        %1987 = vmatprep.subr.mxu0 0.0
        %1988 = vmatpush1.msra.mxu0 0.0
        %1989 = vmatprep.subr.mxu0 0.0
        %1990 = vmatpush1.msra.mxu0 0.0
        %1991 = vmatprep.subr.mxu0 0.0
        %1992 = vmatpush1.msra.mxu0 0.0
        %1993 = vmatprep.subr.mxu0 0.0
        %1994 = vmatpush1.msra.mxu0 0.0
        %1995 = vmatprep.subr.mxu0 0.0
        %1996 = vmatpush1.msra.mxu0 0.0
        %1997 = vmatprep.subr.mxu0 0.0
        %1998 = vmatpush1.msra.mxu0 0.0
        %1999 = vmatprep.subr.mxu0 0.0
        %2000 = vmatpush1.msra.mxu0 0.0
        %2001 = vmatprep.subr.mxu0 0.0
        %2002 = vmatpush1.msra.mxu0 0.0
        %2003 = vmatprep.subr.mxu0 0.0
        %2004 = vmatpush1.msra.mxu0 0.0
        %2005 = vmatprep.subr.mxu0 0.0
        %2006 = vmatpush1.msra.mxu0 0.0
        %2007 = vmatprep.subr.mxu0 0.0
        %2008 = vmatpush1.msra.mxu0 0.0
        %2009 = vmatprep.subr.mxu0 0.0
        %2010 = vmatpush1.msra.mxu0 0.0
        %2011 = vmatprep.subr.mxu0 0.0
        %2012 = vmatpush1.msra.mxu0 0.0
        %2013 = vmatprep.subr.mxu0 0.0
        %2014 = vmatpush1.msra.mxu0 0.0
        %2015 = vmatprep.subr.mxu0 0.0
        %2016 = vmatpush1.msra.mxu0 %v1544
        %2017 = vmatprep.subr.mxu0 0.0
        %2018 = vmatpush2.msra.mxu0 0.0
        %2019 = vmatprep.subr.mxu0 0.0
        %2020 = vmatpush2.msra.mxu0 0.0
        %2021 = vmatprep.subr.mxu0 0.0
        %2022 = vmatpush2.msra.mxu0 0.0
        %2023 = vmatprep.subr.mxu0 0.0
        %2024 = vmatpush2.msra.mxu0 0.0
        %2025 = vmatprep.subr.mxu0 0.0
        %2026 = vmatpush2.msra.mxu0 0.0
        %2027 = vmatprep.subr.mxu0 0.0
        %2028 = vmatpush2.msra.mxu0 0.0
        %2029 = vmatprep.subr.mxu0 0.0
        %2030 = vmatpush2.msra.mxu0 0.0
        %2031 = vmatprep.subr.mxu0 0.0
        %2032 = vmatpush2.msra.mxu0 0.0
        %2033 = vmatprep.subr.mxu0 0.0
        %2034 = vmatpush2.msra.mxu0 0.0
        %2035 = vmatprep.subr.mxu0 0.0
        %2036 = vmatpush2.msra.mxu0 0.0
        %2037 = vmatprep.subr.mxu0 0.0
        %2038 = vmatpush2.msra.mxu0 0.0
        %2039 = vmatprep.subr.mxu0 0.0
        %2040 = vmatpush2.msra.mxu0 0.0
        %2041 = vmatprep.subr.mxu0 0.0
        %2042 = vmatpush2.msra.mxu0 0.0
        %2043 = vmatprep.subr.mxu0 0.0
        %2044 = vmatpush2.msra.mxu0 0.0
        %2045 = vmatprep.subr.mxu0 0.0
        %2046 = vmatpush2.msra.mxu0 0.0
        %2047 = vmatprep.subr.mxu0 0.0
        %2048 = vmatpush2.msra.mxu0 0.0
        %2049 = vmatprep.mubr.f32.mxu0 0.0
        %2050 = vmatmul.mubr.f32.gmra.mxu0 %v1983
        %v2051 = vpop.f32.mrf.mxu0
        %v2052 = vadd.f32 0.0, %v2051
        %v2053 = vpop.f32.mrf.mxu0
        %2054 = vdwg.mxu0
        %v2056 = vsel %vm1547, %v1907, 0
        %2058 = vmatprep.subr.mxu0 0.0
        %2059 = vmatpush1.msra.mxu0 0.0
        %2060 = vmatprep.subr.mxu0 0.0
        %2061 = vmatpush1.msra.mxu0 0.0
        %2062 = vmatprep.subr.mxu0 0.0
        %2063 = vmatpush1.msra.mxu0 0.0
        %2064 = vmatprep.subr.mxu0 0.0
        %2065 = vmatpush1.msra.mxu0 0.0
        %2066 = vmatprep.subr.mxu0 0.0
        %2067 = vmatpush1.msra.mxu0 0.0
        %2068 = vmatprep.subr.mxu0 0.0
        %2069 = vmatpush1.msra.mxu0 0.0
        %2070 = vmatprep.subr.mxu0 0.0
        %2071 = vmatpush1.msra.mxu0 0.0
        %2072 = vmatprep.subr.mxu0 0.0
        %2073 = vmatpush1.msra.mxu0 0.0
        %2074 = vmatprep.subr.mxu0 0.0
        %2075 = vmatpush1.msra.mxu0 0.0
        %2076 = vmatprep.subr.mxu0 0.0
        %2077 = vmatpush1.msra.mxu0 0.0
        %2078 = vmatprep.subr.mxu0 0.0
        %2079 = vmatpush1.msra.mxu0 0.0
        %2080 = vmatprep.subr.mxu0 0.0
        %2081 = vmatpush1.msra.mxu0 0.0
        %2082 = vmatprep.subr.mxu0 0.0
        %2083 = vmatpush1.msra.mxu0 0.0
        %2084 = vmatprep.subr.mxu0 0.0
        %2085 = vmatpush1.msra.mxu0 0.0
        %2086 = vmatprep.subr.mxu0 0.0
        %2087 = vmatpush1.msra.mxu0 0.0
        %2088 = vmatprep.subr.mxu0 0.0
        %2089 = vmatpush1.msra.mxu0 %v1545
        %2090 = vmatprep.subr.mxu0 0.0
        %2091 = vmatpush2.msra.mxu0 0.0
        %2092 = vmatprep.subr.mxu0 0.0
        %2093 = vmatpush2.msra.mxu0 0.0
        %2094 = vmatprep.subr.mxu0 0.0
        %2095 = vmatpush2.msra.mxu0 0.0
        %2096 = vmatprep.subr.mxu0 0.0
        %2097 = vmatpush2.msra.mxu0 0.0
        %2098 = vmatprep.subr.mxu0 0.0
        %2099 = vmatpush2.msra.mxu0 0.0
        %2100 = vmatprep.subr.mxu0 0.0
        %2101 = vmatpush2.msra.mxu0 0.0
        %2102 = vmatprep.subr.mxu0 0.0
        %2103 = vmatpush2.msra.mxu0 0.0
        %2104 = vmatprep.subr.mxu0 0.0
        %2105 = vmatpush2.msra.mxu0 0.0
        %2106 = vmatprep.subr.mxu0 0.0
        %2107 = vmatpush2.msra.mxu0 0.0
        %2108 = vmatprep.subr.mxu0 0.0
        %2109 = vmatpush2.msra.mxu0 0.0
        %2110 = vmatprep.subr.mxu0 0.0
        %2111 = vmatpush2.msra.mxu0 0.0
        %2112 = vmatprep.subr.mxu0 0.0
        %2113 = vmatpush2.msra.mxu0 0.0
        %2114 = vmatprep.subr.mxu0 0.0
        %2115 = vmatpush2.msra.mxu0 0.0
        %2116 = vmatprep.subr.mxu0 0.0
        %2117 = vmatpush2.msra.mxu0 0.0
        %2118 = vmatprep.subr.mxu0 0.0
        %2119 = vmatpush2.msra.mxu0 0.0
        %2120 = vmatprep.subr.mxu0 0.0
        %2121 = vmatpush2.msra.mxu0 0.0
        %2122 = vmatprep.mubr.f32.mxu0 0.0
        %2123 = vmatmul.mubr.f32.gmra.mxu0 %v2056
        %v2124 = vpop.f32.mrf.mxu0
        %v2125 = vadd.f32 0.0, %v2124
        %v2126 = vpop.f32.mrf.mxu0
        %2127 = vdwg.mxu0
        %v2129 = vsel %vm1547, %v1908, 0
        %2131 = vmatprep.subr.mxu0 0.0
        %2132 = vmatpush1.msra.mxu0 0.0
        %2133 = vmatprep.subr.mxu0 0.0
        %2134 = vmatpush1.msra.mxu0 0.0
        %2135 = vmatprep.subr.mxu0 0.0
        %2136 = vmatpush1.msra.mxu0 0.0
        %2137 = vmatprep.subr.mxu0 0.0
        %2138 = vmatpush1.msra.mxu0 0.0
        %2139 = vmatprep.subr.mxu0 0.0
        %2140 = vmatpush1.msra.mxu0 0.0
        %2141 = vmatprep.subr.mxu0 0.0
        %2142 = vmatpush1.msra.mxu0 0.0
        %2143 = vmatprep.subr.mxu0 0.0
        %2144 = vmatpush1.msra.mxu0 0.0
        %2145 = vmatprep.subr.mxu0 0.0
        %2146 = vmatpush1.msra.mxu0 0.0
        %2147 = vmatprep.subr.mxu0 0.0
        %2148 = vmatpush1.msra.mxu0 0.0
        %2149 = vmatprep.subr.mxu0 0.0
        %2150 = vmatpush1.msra.mxu0 0.0
        %2151 = vmatprep.subr.mxu0 0.0
        %2152 = vmatpush1.msra.mxu0 0.0
        %2153 = vmatprep.subr.mxu0 0.0
        %2154 = vmatpush1.msra.mxu0 0.0
        %2155 = vmatprep.subr.mxu0 0.0
        %2156 = vmatpush1.msra.mxu0 0.0
        %2157 = vmatprep.subr.mxu0 0.0
        %2158 = vmatpush1.msra.mxu0 0.0
        %2159 = vmatprep.subr.mxu0 0.0
        %2160 = vmatpush1.msra.mxu0 0.0
        %2161 = vmatprep.subr.mxu0 0.0
        %2162 = vmatpush1.msra.mxu0 %v1546
        %2163 = vmatprep.subr.mxu0 0.0
        %2164 = vmatpush2.msra.mxu0 0.0
        %2165 = vmatprep.subr.mxu0 0.0
        %2166 = vmatpush2.msra.mxu0 0.0
        %2167 = vmatprep.subr.mxu0 0.0
        %2168 = vmatpush2.msra.mxu0 0.0
        %2169 = vmatprep.subr.mxu0 0.0
        %2170 = vmatpush2.msra.mxu0 0.0
        %2171 = vmatprep.subr.mxu0 0.0
        %2172 = vmatpush2.msra.mxu0 0.0
        %2173 = vmatprep.subr.mxu0 0.0
        %2174 = vmatpush2.msra.mxu0 0.0
        %2175 = vmatprep.subr.mxu0 0.0
        %2176 = vmatpush2.msra.mxu0 0.0
        %2177 = vmatprep.subr.mxu0 0.0
        %2178 = vmatpush2.msra.mxu0 0.0
        %2179 = vmatprep.subr.mxu0 0.0
        %2180 = vmatpush2.msra.mxu0 0.0
        %2181 = vmatprep.subr.mxu0 0.0
        %2182 = vmatpush2.msra.mxu0 0.0
        %2183 = vmatprep.subr.mxu0 0.0
        %2184 = vmatpush2.msra.mxu0 0.0
        %2185 = vmatprep.subr.mxu0 0.0
        %2186 = vmatpush2.msra.mxu0 0.0
        %2187 = vmatprep.subr.mxu0 0.0
        %2188 = vmatpush2.msra.mxu0 0.0
        %2189 = vmatprep.subr.mxu0 0.0
        %2190 = vmatpush2.msra.mxu0 0.0
        %2191 = vmatprep.subr.mxu0 0.0
        %2192 = vmatpush2.msra.mxu0 0.0
        %2193 = vmatprep.subr.mxu0 0.0
        %2194 = vmatpush2.msra.mxu0 0.0
        %2195 = vmatprep.mubr.f32.mxu0 0.0
        %2196 = vmatmul.mubr.f32.gmra.mxu0 %v2129
        %v2197 = vpop.f32.mrf.mxu0
        %v2198 = vadd.f32 0.0, %v2197
        %v2199 = vpop.f32.mrf.mxu0
        %2200 = vdwg.mxu0
        %v2201 = vld [vmem:[%s10] sm:$0xff]
        %v2202 = vld [vmem:[%s10 + $0x8] sm:$0xff]
        %v2203 = vld [vmem:[%s10 + $0x10] sm:$0xff]
        %v2204 = vld [vmem:[%s10 + $0x18] sm:$0xff]
        %v2206 = vsel %vm1547, %v1979, 0
        %2208 = vmatprep.subr.mxu0 0.0
        %2209 = vmatpush1.msra.mxu0 0.0
        %2210 = vmatprep.subr.mxu0 0.0
        %2211 = vmatpush1.msra.mxu0 0.0
        %2212 = vmatprep.subr.mxu0 0.0
        %2213 = vmatpush1.msra.mxu0 0.0
        %2214 = vmatprep.subr.mxu0 0.0
        %2215 = vmatpush1.msra.mxu0 0.0
        %2216 = vmatprep.subr.mxu0 0.0
        %2217 = vmatpush1.msra.mxu0 0.0
        %2218 = vmatprep.subr.mxu0 0.0
        %2219 = vmatpush1.msra.mxu0 0.0
        %2220 = vmatprep.subr.mxu0 0.0
        %2221 = vmatpush1.msra.mxu0 0.0
        %2222 = vmatprep.subr.mxu0 0.0
        %2223 = vmatpush1.msra.mxu0 0.0
        %2224 = vmatprep.subr.mxu0 0.0
        %2225 = vmatpush1.msra.mxu0 0.0
        %2226 = vmatprep.subr.mxu0 0.0
        %2227 = vmatpush1.msra.mxu0 0.0
        %2228 = vmatprep.subr.mxu0 0.0
        %2229 = vmatpush1.msra.mxu0 0.0
        %2230 = vmatprep.subr.mxu0 0.0
        %2231 = vmatpush1.msra.mxu0 0.0
        %2232 = vmatprep.subr.mxu0 0.0
        %2233 = vmatpush1.msra.mxu0 0.0
        %2234 = vmatprep.subr.mxu0 0.0
        %2235 = vmatpush1.msra.mxu0 0.0
        %2236 = vmatprep.subr.mxu0 0.0
        %2237 = vmatpush1.msra.mxu0 0.0
        %2238 = vmatprep.subr.mxu0 0.0
        %2239 = vmatpush1.msra.mxu0 %v2201
        %2240 = vmatprep.subr.mxu0 0.0
        %2241 = vmatpush2.msra.mxu0 0.0
        %2242 = vmatprep.subr.mxu0 0.0
        %2243 = vmatpush2.msra.mxu0 0.0
        %2244 = vmatprep.subr.mxu0 0.0
        %2245 = vmatpush2.msra.mxu0 0.0
        %2246 = vmatprep.subr.mxu0 0.0
        %2247 = vmatpush2.msra.mxu0 0.0
        %2248 = vmatprep.subr.mxu0 0.0
        %2249 = vmatpush2.msra.mxu0 0.0
        %2250 = vmatprep.subr.mxu0 0.0
        %2251 = vmatpush2.msra.mxu0 0.0
        %2252 = vmatprep.subr.mxu0 0.0
        %2253 = vmatpush2.msra.mxu0 0.0
        %2254 = vmatprep.subr.mxu0 0.0
        %2255 = vmatpush2.msra.mxu0 0.0
        %2256 = vmatprep.subr.mxu0 0.0
        %2257 = vmatpush2.msra.mxu0 0.0
        %2258 = vmatprep.subr.mxu0 0.0
        %2259 = vmatpush2.msra.mxu0 0.0
        %2260 = vmatprep.subr.mxu0 0.0
        %2261 = vmatpush2.msra.mxu0 0.0
        %2262 = vmatprep.subr.mxu0 0.0
        %2263 = vmatpush2.msra.mxu0 0.0
        %2264 = vmatprep.subr.mxu0 0.0
        %2265 = vmatpush2.msra.mxu0 0.0
        %2266 = vmatprep.subr.mxu0 0.0
        %2267 = vmatpush2.msra.mxu0 0.0
        %2268 = vmatprep.subr.mxu0 0.0
        %2269 = vmatpush2.msra.mxu0 0.0
        %2270 = vmatprep.subr.mxu0 0.0
        %2271 = vmatpush2.msra.mxu0 0.0
        %2272 = vmatprep.mubr.f32.mxu0 0.0
        %2273 = vmatmul.mubr.f32.gmra.mxu0 %v2206
        %v2274 = vpop.f32.mrf.mxu0
        %v2275 = vadd.f32 0.0, %v2274
        %v2276 = vpop.f32.mrf.mxu0
        %2277 = vdwg.mxu0
        %v2279 = vsel %vm1547, %v2052, 0
        %2281 = vmatprep.subr.mxu0 0.0
        %2282 = vmatpush1.msra.mxu0 0.0
        %2283 = vmatprep.subr.mxu0 0.0
        %2284 = vmatpush1.msra.mxu0 0.0
        %2285 = vmatprep.subr.mxu0 0.0
        %2286 = vmatpush1.msra.mxu0 0.0
        %2287 = vmatprep.subr.mxu0 0.0
        %2288 = vmatpush1.msra.mxu0 0.0
        %2289 = vmatprep.subr.mxu0 0.0
        %2290 = vmatpush1.msra.mxu0 0.0
        %2291 = vmatprep.subr.mxu0 0.0
        %2292 = vmatpush1.msra.mxu0 0.0
        %2293 = vmatprep.subr.mxu0 0.0
        %2294 = vmatpush1.msra.mxu0 0.0
        %2295 = vmatprep.subr.mxu0 0.0
        %2296 = vmatpush1.msra.mxu0 0.0
        %2297 = vmatprep.subr.mxu0 0.0
        %2298 = vmatpush1.msra.mxu0 0.0
        %2299 = vmatprep.subr.mxu0 0.0
        %2300 = vmatpush1.msra.mxu0 0.0
        %2301 = vmatprep.subr.mxu0 0.0
        %2302 = vmatpush1.msra.mxu0 0.0
        %2303 = vmatprep.subr.mxu0 0.0
        %2304 = vmatpush1.msra.mxu0 0.0
        %2305 = vmatprep.subr.mxu0 0.0
        %2306 = vmatpush1.msra.mxu0 0.0
        %2307 = vmatprep.subr.mxu0 0.0
        %2308 = vmatpush1.msra.mxu0 0.0
        %2309 = vmatprep.subr.mxu0 0.0
        %2310 = vmatpush1.msra.mxu0 0.0
        %2311 = vmatprep.subr.mxu0 0.0
        %2312 = vmatpush1.msra.mxu0 %v2202
        %2313 = vmatprep.subr.mxu0 0.0
        %2314 = vmatpush2.msra.mxu0 0.0
        %2315 = vmatprep.subr.mxu0 0.0
        %2316 = vmatpush2.msra.mxu0 0.0
        %2317 = vmatprep.subr.mxu0 0.0
        %2318 = vmatpush2.msra.mxu0 0.0
        %2319 = vmatprep.subr.mxu0 0.0
        %2320 = vmatpush2.msra.mxu0 0.0
        %2321 = vmatprep.subr.mxu0 0.0
        %2322 = vmatpush2.msra.mxu0 0.0
        %2323 = vmatprep.subr.mxu0 0.0
        %2324 = vmatpush2.msra.mxu0 0.0
        %2325 = vmatprep.subr.mxu0 0.0
        %2326 = vmatpush2.msra.mxu0 0.0
        %2327 = vmatprep.subr.mxu0 0.0
        %2328 = vmatpush2.msra.mxu0 0.0
        %2329 = vmatprep.subr.mxu0 0.0
        %2330 = vmatpush2.msra.mxu0 0.0
        %2331 = vmatprep.subr.mxu0 0.0
        %2332 = vmatpush2.msra.mxu0 0.0
        %2333 = vmatprep.subr.mxu0 0.0
        %2334 = vmatpush2.msra.mxu0 0.0
        %2335 = vmatprep.subr.mxu0 0.0
        %2336 = vmatpush2.msra.mxu0 0.0
        %2337 = vmatprep.subr.mxu0 0.0
        %2338 = vmatpush2.msra.mxu0 0.0
        %2339 = vmatprep.subr.mxu0 0.0
        %2340 = vmatpush2.msra.mxu0 0.0
        %2341 = vmatprep.subr.mxu0 0.0
        %2342 = vmatpush2.msra.mxu0 0.0
        %2343 = vmatprep.subr.mxu0 0.0
        %2344 = vmatpush2.msra.mxu0 0.0
        %2345 = vmatprep.mubr.f32.mxu0 0.0
        %2346 = vmatmul.mubr.f32.gmra.mxu0 %v2279
        %v2347 = vpop.f32.mrf.mxu0
        %v2348 = vadd.f32 0.0, %v2347
        %v2349 = vpop.f32.mrf.mxu0
        %2350 = vdwg.mxu0
        %v2352 = vsel %vm1547, %v2125, 0
        %2354 = vmatprep.subr.mxu0 0.0
        %2355 = vmatpush1.msra.mxu0 0.0
        %2356 = vmatprep.subr.mxu0 0.0
        %2357 = vmatpush1.msra.mxu0 0.0
        %2358 = vmatprep.subr.mxu0 0.0
        %2359 = vmatpush1.msra.mxu0 0.0
        %2360 = vmatprep.subr.mxu0 0.0
        %2361 = vmatpush1.msra.mxu0 0.0
        %2362 = vmatprep.subr.mxu0 0.0
        %2363 = vmatpush1.msra.mxu0 0.0
        %2364 = vmatprep.subr.mxu0 0.0
        %2365 = vmatpush1.msra.mxu0 0.0
        %2366 = vmatprep.subr.mxu0 0.0
        %2367 = vmatpush1.msra.mxu0 0.0
        %2368 = vmatprep.subr.mxu0 0.0
        %2369 = vmatpush1.msra.mxu0 0.0
        %2370 = vmatprep.subr.mxu0 0.0
        %2371 = vmatpush1.msra.mxu0 0.0
        %2372 = vmatprep.subr.mxu0 0.0
        %2373 = vmatpush1.msra.mxu0 0.0
        %2374 = vmatprep.subr.mxu0 0.0
        %2375 = vmatpush1.msra.mxu0 0.0
        %2376 = vmatprep.subr.mxu0 0.0
        %2377 = vmatpush1.msra.mxu0 0.0
        %2378 = vmatprep.subr.mxu0 0.0
        %2379 = vmatpush1.msra.mxu0 0.0
        %2380 = vmatprep.subr.mxu0 0.0
        %2381 = vmatpush1.msra.mxu0 0.0
        %2382 = vmatprep.subr.mxu0 0.0
        %2383 = vmatpush1.msra.mxu0 0.0
        %2384 = vmatprep.subr.mxu0 0.0
        %2385 = vmatpush1.msra.mxu0 %v2203
        %2386 = vmatprep.subr.mxu0 0.0
        %2387 = vmatpush2.msra.mxu0 0.0
        %2388 = vmatprep.subr.mxu0 0.0
        %2389 = vmatpush2.msra.mxu0 0.0
        %2390 = vmatprep.subr.mxu0 0.0
        %2391 = vmatpush2.msra.mxu0 0.0
        %2392 = vmatprep.subr.mxu0 0.0
        %2393 = vmatpush2.msra.mxu0 0.0
        %2394 = vmatprep.subr.mxu0 0.0
        %2395 = vmatpush2.msra.mxu0 0.0
        %2396 = vmatprep.subr.mxu0 0.0
        %2397 = vmatpush2.msra.mxu0 0.0
        %2398 = vmatprep.subr.mxu0 0.0
        %2399 = vmatpush2.msra.mxu0 0.0
        %2400 = vmatprep.subr.mxu0 0.0
        %2401 = vmatpush2.msra.mxu0 0.0
        %2402 = vmatprep.subr.mxu0 0.0
        %2403 = vmatpush2.msra.mxu0 0.0
        %2404 = vmatprep.subr.mxu0 0.0
        %2405 = vmatpush2.msra.mxu0 0.0
        %2406 = vmatprep.subr.mxu0 0.0
        %2407 = vmatpush2.msra.mxu0 0.0
        %2408 = vmatprep.subr.mxu0 0.0
        %2409 = vmatpush2.msra.mxu0 0.0
        %2410 = vmatprep.subr.mxu0 0.0
        %2411 = vmatpush2.msra.mxu0 0.0
        %2412 = vmatprep.subr.mxu0 0.0
        %2413 = vmatpush2.msra.mxu0 0.0
        %2414 = vmatprep.subr.mxu0 0.0
        %2415 = vmatpush2.msra.mxu0 0.0
        %2416 = vmatprep.subr.mxu0 0.0
        %2417 = vmatpush2.msra.mxu0 0.0
        %2418 = vmatprep.mubr.f32.mxu0 0.0
        %2419 = vmatmul.mubr.f32.gmra.mxu0 %v2352
        %v2420 = vpop.f32.mrf.mxu0
        %v2421 = vadd.f32 0.0, %v2420
        %v2422 = vpop.f32.mrf.mxu0
        %2423 = vdwg.mxu0
        %v2425 = vsel %vm1547, %v2198, 0
        %2427 = vmatprep.subr.mxu0 0.0
        %2428 = vmatpush1.msra.mxu0 0.0
        %2429 = vmatprep.subr.mxu0 0.0
        %2430 = vmatpush1.msra.mxu0 0.0
        %2431 = vmatprep.subr.mxu0 0.0
        %2432 = vmatpush1.msra.mxu0 0.0
        %2433 = vmatprep.subr.mxu0 0.0
        %2434 = vmatpush1.msra.mxu0 0.0
        %2435 = vmatprep.subr.mxu0 0.0
        %2436 = vmatpush1.msra.mxu0 0.0
        %2437 = vmatprep.subr.mxu0 0.0
        %2438 = vmatpush1.msra.mxu0 0.0
        %2439 = vmatprep.subr.mxu0 0.0
        %2440 = vmatpush1.msra.mxu0 0.0
        %2441 = vmatprep.subr.mxu0 0.0
        %2442 = vmatpush1.msra.mxu0 0.0
        %2443 = vmatprep.subr.mxu0 0.0
        %2444 = vmatpush1.msra.mxu0 0.0
        %2445 = vmatprep.subr.mxu0 0.0
        %2446 = vmatpush1.msra.mxu0 0.0
        %2447 = vmatprep.subr.mxu0 0.0
        %2448 = vmatpush1.msra.mxu0 0.0
        %2449 = vmatprep.subr.mxu0 0.0
        %2450 = vmatpush1.msra.mxu0 0.0
        %2451 = vmatprep.subr.mxu0 0.0
        %2452 = vmatpush1.msra.mxu0 0.0
        %2453 = vmatprep.subr.mxu0 0.0
        %2454 = vmatpush1.msra.mxu0 0.0
        %2455 = vmatprep.subr.mxu0 0.0
        %2456 = vmatpush1.msra.mxu0 0.0
        %2457 = vmatprep.subr.mxu0 0.0
        %2458 = vmatpush1.msra.mxu0 %v2204
        %2459 = vmatprep.subr.mxu0 0.0
        %2460 = vmatpush2.msra.mxu0 0.0
        %2461 = vmatprep.subr.mxu0 0.0
        %2462 = vmatpush2.msra.mxu0 0.0
        %2463 = vmatprep.subr.mxu0 0.0
        %2464 = vmatpush2.msra.mxu0 0.0
        %2465 = vmatprep.subr.mxu0 0.0
        %2466 = vmatpush2.msra.mxu0 0.0
        %2467 = vmatprep.subr.mxu0 0.0
        %2468 = vmatpush2.msra.mxu0 0.0
        %2469 = vmatprep.subr.mxu0 0.0
        %2470 = vmatpush2.msra.mxu0 0.0
        %2471 = vmatprep.subr.mxu0 0.0
        %2472 = vmatpush2.msra.mxu0 0.0
        %2473 = vmatprep.subr.mxu0 0.0
        %2474 = vmatpush2.msra.mxu0 0.0
        %2475 = vmatprep.subr.mxu0 0.0
        %2476 = vmatpush2.msra.mxu0 0.0
        %2477 = vmatprep.subr.mxu0 0.0
        %2478 = vmatpush2.msra.mxu0 0.0
        %2479 = vmatprep.subr.mxu0 0.0
        %2480 = vmatpush2.msra.mxu0 0.0
        %2481 = vmatprep.subr.mxu0 0.0
        %2482 = vmatpush2.msra.mxu0 0.0
        %2483 = vmatprep.subr.mxu0 0.0
        %2484 = vmatpush2.msra.mxu0 0.0
        %2485 = vmatprep.subr.mxu0 0.0
        %2486 = vmatpush2.msra.mxu0 0.0
        %2487 = vmatprep.subr.mxu0 0.0
        %2488 = vmatpush2.msra.mxu0 0.0
        %2489 = vmatprep.subr.mxu0 0.0
        %2490 = vmatpush2.msra.mxu0 0.0
        %2491 = vmatprep.mubr.f32.mxu0 0.0
        %2492 = vmatmul.mubr.f32.gmra.mxu0 %v2425
        %v2493 = vpop.f32.mrf.mxu0
        %v2494 = vadd.f32 0.0, %v2493
        %v2495 = vpop.f32.mrf.mxu0
        %2496 = vdwg.mxu0
        %v2497 = vsel %vm1251, %v2275, 0.0
        %v2498 = vsel %vm1251, %v2348, 0.0
        %v2499 = vadd.f32 %v2497, %v2498
        %v2500 = vsel %vm1251, %v2421, 0.0
        %v2501 = vadd.f32 %v2499, %v2500
        %v2502 = vsel %vm1251, %v2494, 0.0
        %v2503 = vadd.f32 %v2501, %v2502
        %v2504 = vld [vmem:[%s11] sm:$0x1]
        %v2506 = vlaneseq
        %v2507 = vshrl.u32 %v2506, 7
        %v2508 = vsub.s32 0, %v2507
        %v2509 = vrot.slane %v2504, %v2508
        %v2511 = vadd.f32 %v2503, %v2509
        %2512 = vst.msk [vmem:[%s506] sm:$0xff] %vm1251, %v2511
        %s2513 = sand.u32 %s329, 1
        %s2514 = scalar_lea.sflag [#allocation5], %s2513
        %s2515 = sand.u32 %s329, 1
        %s2516 = smul.addr %s2515, 8
        %s2517 = scalar_lea.vmem [#allocation4], %s2516
        %s2518 = sand.u32 %s357, 1
        %s2519 = scalar_lea.sflag [#allocation7], %s2518
        %s2520 = sand.u32 %s357, 1
        %s2521 = smul.addr %s2520, 32
        %s2522 = scalar_lea.vmem [#allocation6], %s2521
        // Predicated region
        $region73: #{tpu_custom_call.1} parent=67 // pred_check
          %p2523 = pneg %p339
        $region74: #{tpu_custom_call.1} parent=67 // pred_check_branch
          %2525 = sbr.rel (%p2523) target = $region76
        $region75: #{tpu_custom_call.1} parent=67 // pred_region
          %s2527 = ssub.s32 128, 128
          %2528 = vsyncadd %s2514, %s2527
          %s2529 = sadd.s32 %s36, %s35
          %s2530 = smul.addr %s2529, 128
          %s2531 = scalar_lea.hbm %s12, %s2530
          %s2533 = sshll.u32 %s2517, 4
          %s2534 = int_to_ptr.vmem [resolvable:$true] %s2533
          %2536 = dma.vmem_to_hbm [thread:$0]  %s2534, 128, %s2531, %s2514
        $region76: #{tpu_custom_call.1} parent=67 // pred_fallthru
          _
        // Predicated region
        $region77: #{tpu_custom_call.1} parent=67 // pred_check
          %p2537 = pneg %p367
        $region78: #{tpu_custom_call.1} parent=67 // pred_check_branch
          %2539 = sbr.rel (%p2537) target = $region80
        $region79: #{tpu_custom_call.1} parent=67 // pred_region
          %s2541 = ssub.s32 512, 512
          %2542 = vsyncadd %s2519, %s2541
          %s2543 = smul.addr %s35, 4
          %s2544 = sadd.s32 %s36, %s2543
          %s2545 = smul.addr %s2544, 128
          %s2546 = scalar_lea.hbm %s13, %s2545
          %s2547 = sshll.u32 %s2522, 4
          %s2548 = int_to_ptr.vmem [resolvable:$true] %s2547
          %2553 = dma.vmem_to_hbm [thread:$0]  %s2548, 512, %s2546, %s2519, 128, 128, 8
        $region80: #{tpu_custom_call.1} parent=67 // pred_fallthru
          _
      $region68: #{tpu_custom_call.1} parent=5 // pred_fallthru
        _
      %p2554 = scmp.le.s32.totalorder 2, %s26
      // Predicated region
      $region81: #{tpu_custom_call.1} parent=5 // pred_check
        %p2555 = pneg %p2554
      $region82: #{tpu_custom_call.1} parent=5 // pred_check_branch
        %2557 = sbr.rel (%p2555) target = $region84
      $region83: #{tpu_custom_call.1} parent=5 // pred_region
        %s2558 = ssub.s32 %s26, 2
        // Predicated region
        $region85: #{tpu_custom_call.1} parent=83 // pred_check
          %p2559 = pneg %p345
        $region86: #{tpu_custom_call.1} parent=83 // pred_check_branch
          %2561 = sbr.rel (%p2559) target = $region88
        $region87: #{tpu_custom_call.1} parent=83 // pred_region
          %s2562 = sand.u32 %s330, 1
          %s2563 = scalar_lea.sflag [#allocation5], %s2562
          %s2564 = sand.u32 %s330, 1
          %s2565 = smul.addr %s2564, 8
          %s2566 = scalar_lea.vmem [#allocation4], %s2565
          %2567 = dma.done %s2563, 128
        $region88: #{tpu_custom_call.1} parent=83 // pred_fallthru
          _
        // Predicated region
        $region89: #{tpu_custom_call.1} parent=83 // pred_check
          %p2568 = pneg %p373
        $region90: #{tpu_custom_call.1} parent=83 // pred_check_branch
          %2570 = sbr.rel (%p2568) target = $region92
        $region91: #{tpu_custom_call.1} parent=83 // pred_region
          %s2571 = sand.u32 %s358, 1
          %s2572 = scalar_lea.sflag [#allocation7], %s2571
          %s2573 = sand.u32 %s358, 1
          %s2574 = smul.addr %s2573, 32
          %s2575 = scalar_lea.vmem [#allocation6], %s2574
          %2576 = dma.done %s2572, 512
        $region92: #{tpu_custom_call.1} parent=83 // pred_fallthru
          _
      $region84: #{tpu_custom_call.1} parent=5 // pred_fallthru
        _
    $region6: #{tpu_custom_call.1} parent=1 // loop_footer
      %s30 = sadd.s32 1, %s26
    $region7: #{tpu_custom_call.1} parent=1 // loop_footer_branch
      %25 = sbr.rel target = $region3
    $region8: #{tpu_custom_call.1} parent=1 // loop_exit
      _
    %2577 = vsyncpa [#allocation5], 1
    %s2578 = scalar_lea.sflag [#allocation5], 1
    %2579 = vsyncpa %s2578, 1
    %2580 = vsyncpa [#allocation7], 1
    %s2581 = scalar_lea.sflag [#allocation7], 1
    %2582 = vsyncpa %s2581, 1

</llo_original>
